<compile_context>
chip_gen: v6e
topology: v6e:2x2x1
jax: 0.10.0
libtpu: 0.0.40
codegen_flags: <defaults>
</compile_context>

<pallas_src>
import functools
import numpy as np
import jax
import jax.numpy as jnp
from jax.experimental import pallas as pl
from jax.experimental.pallas import tpu as pltpu


# ----------------------------------------------------------------------------
# Gauss / Karatsuba 3-multiply complex matmuls (f32 MXU accumulation).
# A constant operand ships as the quadruple (Ar, Ai, Ar+Ai, Ar-Ai) so the
# conjugate (inverse-DFT) product needs no negated copy and no in-kernel adds.
# ----------------------------------------------------------------------------
def _glmul(A, xr, xi, conj, mm_dtype):
    """(Ar +/- j Ai) @ (xr + j xi) with 3 real MXU matmuls."""
    ar, ai, asum, adiff = A
    xrc = xr.astype(mm_dtype)
    xic = xi.astype(mm_dtype)
    xsc = (xr + xi).astype(mm_dtype)
    t1 = jnp.dot(ar, xrc, preferred_element_type=jnp.float32)
    t2 = jnp.dot(ai, xic, preferred_element_type=jnp.float32)
    if conj:                                        # (Ar - j Ai) @ X
        t3 = jnp.dot(adiff, xsc, preferred_element_type=jnp.float32)
        return t1 + t2, t3 - t1 + t2
    t3 = jnp.dot(asum, xsc, preferred_element_type=jnp.float32)
    return t1 - t2, t3 - t1 - t2


def _grmul(xr, xi, B, conj, mm_dtype):
    """(xr + j xi) @ (Br +/- j Bi); rows may be nb*M1 (batched over fields)."""
    br, bi, bsum, bdiff = B
    xrc = xr.astype(mm_dtype)
    xic = xi.astype(mm_dtype)
    xsc = (xr + xi).astype(mm_dtype)
    u1 = jnp.dot(xrc, br, preferred_element_type=jnp.float32)
    u2 = jnp.dot(xic, bi, preferred_element_type=jnp.float32)
    if conj:
        u3 = jnp.dot(xsc, bdiff, preferred_element_type=jnp.float32)
        return u1 + u2, u3 - u1 + u2
    u3 = jnp.dot(xsc, bsum, preferred_element_type=jnp.float32)
    return u1 - u2, u3 - u1 - u2


def _cdft2_block(xr3, xi3, A, B, conj, scale, mm_dtype):
    """Complex 2-D transform of a (nb, M1, M2) block:
         Y[n] = scale * (A_eff @ X[n] @ B_eff),  A_eff/B_eff = A or conj(A).
    Left multiplies run per field; right multiplies are batched into ONE
    (nb*M1, M2) @ (M2, M2) matmul per Gauss term to fill the MXU."""
    nb, M1, M2 = xr3.shape
    trs, tis = [], []
    for n in range(nb):
        tr_n, ti_n = _glmul(A, xr3[n], xi3[n], conj, mm_dtype)
        trs.append(tr_n)
        tis.append(ti_n)
    if nb == 1:
        tr2, ti2 = trs[0], tis[0]
    else:
        tr2 = jnp.concatenate(trs, axis=0)          # (nb*M1, M2), free reshape back
        ti2 = jnp.concatenate(tis, axis=0)
    yr, yi = _grmul(tr2, ti2, B, conj, mm_dtype)
    yr = yr.reshape(nb, M1, M2)
    yi = yi.reshape(nb, M1, M2)
    if scale != 1.0:
        yr = yr * scale
        yi = yi * scale
    return yr, yi


# ----------------------------------------------------------------------------
# Exact per-block top-beta candidates of |Bn|^2 (replaces the full-plane write
# + global sort).  TODO(synk): for beta >> 128 switch to a multi-pass scheme.
# ----------------------------------------------------------------------------
def _cand_rows(nb, beta):
    rows = -(-(nb * beta) // 128)
    return max(8, 8 * (-(-rows // 8)))


def _field_topk(mag2, beta):
    """Top-`beta` values (with multiplicity) of one (M1, M2) nonneg plane."""
    M1, M2 = mag2.shape
    lin = (jax.lax.broadcasted_iota(jnp.int32, (M1, M2), 0) * M2
           + jax.lax.broadcasted_iota(jnp.int32, (M1, M2), 1))
    big = jnp.int32(M1 * M2)
    vals = mag2
    out = []
    for _ in range(beta):
        m = jnp.max(vals)
        pos = jnp.min(jnp.where(vals == m, lin, big))   # first occurrence only
        vals = jnp.where(lin == pos, -1.0, vals)        # valid: mag2 >= 0
        out.append(m)
    return out


def _emit_candidates(bn_r, bn_i, cand_ref, beta, cand_rows):
    """Write the per-block top-beta |Bn|^2 candidates into a lane-dense
    (cand_rows, 128) tile padded with -1 (never selected by the global top-k)."""
    nb = bn_r.shape[0]
    scalars = []
    for n in range(nb):
        mag2 = bn_r[n] * bn_r[n] + bn_i[n] * bn_i[n]
        scalars.extend(_field_topk(mag2, beta))
    lin = (jax.lax.broadcasted_iota(jnp.int32, (cand_rows, 128), 0) * 128
           + jax.lax.broadcasted_iota(jnp.int32, (cand_rows, 128), 1))
    tile = jnp.full((cand_rows, 128), -1.0, jnp.float32)
    for t, v in enumerate(scalars):                 # static-index selects
        tile = jnp.where(lin == t, v, tile)
    cand_ref[...] = tile.reshape(1, cand_rows, 128)


# ----------------------------------------------------------------------------
# Kernel 1 (init): iteration 0 specialised.  X0 = 0, B0 = fft2(ones)  =>
#   conv = 0, ifft2(B0) = 1, W = 1, Qc = H, P0 = 0, Bn0 = fft2(H).
# ----------------------------------------------------------------------------
def _init_kernel(mm_dtype, beta, cand_rows,
                 hr_ref, hi_ref,
                 f1r_ref, f1i_ref, f1s_ref, f1d_ref,
                 f2r_ref, f2i_ref, f2s_ref, f2d_ref,
                 bnr_ref, bni_ref, cand_ref):
    F1 = (f1r_ref[...], f1i_ref[...], f1s_ref[...], f1d_ref[...])
    F2 = (f2r_ref[...], f2i_ref[...], f2s_ref[...], f2d_ref[...])
    bnr, bni = _cdft2_block(hr_ref[...], hi_ref[...], F1, F2,
                            conj=False, scale=1.0, mm_dtype=mm_dtype)
    bnr_ref[...] = bnr
    bni_ref[...] = bni
    _emit_candidates(bnr, bni, cand_ref, beta, cand_rows)


# ----------------------------------------------------------------------------
# Kernel 2 (fused): stage 2 of iteration i fused with stage 1 of iteration i+1.
#   Bm  = Bn * (|Bn|^2 >= thr2)                                  (aux_B)
#   fft2(Qc - ifft2(Bm)) = P + Bn - Bm                           (shortcut)
#   input_1 = ifft2((P + Bn - Bm) * conj(T));  X = input_1 * (|input_1|^2>lam^2)
#   P'   = fft2(X) * T ;  conv = ifft2(P')
#   W    = normalize(conv + ifft2(Bm))          (written only if emit_w)
#   Bn'  = fft2(H*W - conv) ;  candidates from |Bn'|^2
# ----------------------------------------------------------------------------
def _fused_kernel(mm_dtype, lam2, emit_w, beta, cand_rows,
                  scal_ref, pr_ref, pi_ref, bnr_ref, bni_ref, hr_ref, hi_ref,
                  tr_ref, ti_ref,
                  f1r_ref, f1i_ref, f1s_ref, f1d_ref,
                  f2r_ref, f2i_ref, f2s_ref, f2d_ref,
                  *out_refs):
    if emit_w:
        pro_ref, pio_ref, bnro_ref, bnio_ref, cand_ref, wr_ref, wi_ref = out_refs
    else:
        pro_ref, pio_ref, bnro_ref, bnio_ref, cand_ref = out_refs

    thr2 = scal_ref[0]
    F1 = (f1r_ref[...], f1i_ref[...], f1s_ref[...], f1d_ref[...])
    F2 = (f2r_ref[...], f2i_ref[...], f2s_ref[...], f2d_ref[...])
    tr, ti = tr_ref[...], ti_ref[...]
    M1, M2 = tr.shape
    inv = 1.0 / float(M1 * M2)
    cdft = functools.partial(_cdft2_block, mm_dtype=mm_dtype)

    # ---- stage 2 of the previous iteration (elementwise + one inverse DFT) --
    pr, pi = pr_ref[...], pi_ref[...]
    bnr, bni = bnr_ref[...], bni_ref[...]
    magb2 = bnr * bnr + bni * bni
    keep_b = magb2 >= thr2
    bmr = jnp.where(keep_b, bnr, 0.0)               # aux_B for this iteration
    bmi = jnp.where(keep_b, bni, 0.0)
    fdr = pr + (bnr - bmr)                          # = P + (1-mask)*Bn
    fdi = pi + (bni - bmi)
    gr = fdr * tr + fdi * ti                        # * conj(T)
    gi = fdi * tr - fdr * ti
    i1r, i1i = cdft(gr, gi, F1, F2, conj=True, scale=inv)
    keep_x = (i1r * i1r + i1i * i1i) > lam2         # the fused kernel never runs
    xr = jnp.where(keep_x, i1r, 0.0)                # the last-iteration unmasked
    xi = jnp.where(keep_x, i1i, 0.0)                # aux_X branch (j < niter-1)

    # ---- stage 1 of the current iteration -----------------------------------
    fxr, fxi = cdft(xr, xi, F1, F2, conj=False, scale=1.0)
    p_r = fxr * tr - fxi * ti                       # P = fft2(X) * T
    p_i = fxr * ti + fxi * tr
    pro_ref[...] = p_r
    pio_ref[...] = p_i
    cr, ci = cdft(p_r, p_i, F1, F2, conj=True, scale=inv)     # conv = ifft2(P)
    ibr, ibi = cdft(bmr, bmi, F1, F2, conj=True, scale=inv)   # ifft2(aux_B)
    w0r = cr + ibr
    w0i = ci + ibi
    rinv = jax.lax.rsqrt(jnp.maximum(w0r * w0r + w0i * w0i, 1e-36))
    wr = w0r * rinv                                 # aux_W = W0 / |W0|
    wi = w0i * rinv
    if emit_w:
        wr_ref[...] = wr
        wi_ref[...] = wi
    hr, hi = hr_ref[...], hi_ref[...]
    qr = hr * wr - hi * wi                          # Qc = H * aux_W
    qi = hr * wi + hi * wr
    bn_r, bn_i = cdft(qr - cr, qi - ci, F1, F2, conj=False, scale=1.0)
    bnro_ref[...] = bn_r
    bnio_ref[...] = bn_i
    _emit_candidates(bn_r, bn_i, cand_ref, beta, cand_rows)


# ----------------------------------------------------------------------------
# pallas_call wrappers (grid over the batch, nb fields per block)
# ----------------------------------------------------------------------------
def _field_spec(nb, M1, M2):
    return pl.BlockSpec((nb, M1, M2), lambda n: (n, 0, 0))


def _const_specs(M1, M2, with_t):
    m1 = pl.BlockSpec((M1, M1), lambda n: (0, 0))
    m2 = pl.BlockSpec((M2, M2), lambda n: (0, 0))
    t = pl.BlockSpec((M1, M2), lambda n: (0, 0))
    return ([t, t] if with_t else []) + [m1] * 4 + [m2] * 4


def _vmem_limit(nb, M1, M2, n_planes_io, mm_bytes):
    plane = nb * M1 * M2 * 4
    io = n_planes_io * plane * 2                    # double-buffered blocks
    consts = ((4 * M1 * M1 + 4 * M2 * M2) * mm_bytes + 2 * M1 * M2 * 4) * 2
    temps = 24 * plane                              # DFT temporaries headroom
    need = io + consts + temps + (1 << 20)
    # TODO(synk): on v7x (64 MiB physical VMEM) cap nb so `need` stays <= ~48 MiB.
    return int(min(max(need, 32 * 1024 * 1024), 48 * 1024 * 1024))


def spr_init(hr, hi, mats, *, nb, mm_dtype, beta):
    N, M1, M2 = hr.shape
    assert N % nb == 0
    nblk = N // nb
    cand_rows = _cand_rows(nb, beta)
    fspec = _field_spec(nb, M1, M2)
    cspec = pl.BlockSpec((1, cand_rows, 128), lambda n: (n, 0, 0))
    mm_bytes = jnp.dtype(mm_dtype).itemsize
    cost = pl.CostEstimate(flops=6 * N * M1 * M2 * (M1 + M2),
                           transcendentals=0,
                           bytes_accessed=4 * N * M1 * M2 * 4)
    return pl.pallas_call(
        functools.partial(_init_kernel, mm_dtype, beta, cand_rows),
        grid=(nblk,),
        in_specs=[fspec, fspec] + _const_specs(M1, M2, with_t=False),
        out_specs=(fspec, fspec, cspec),
        out_shape=(jax.ShapeDtypeStruct((N, M1, M2), jnp.float32),
                   jax.ShapeDtypeStruct((N, M1, M2), jnp.float32),
                   jax.ShapeDtypeStruct((nblk, cand_rows, 128), jnp.float32)),
        compiler_params=pltpu.CompilerParams(
            dimension_semantics=("parallel",),
            vmem_limit_bytes=_vmem_limit(nb, M1, M2, 5, mm_bytes)),
        cost_estimate=cost,
    )(hr, hi, *mats)


def spr_fused_step(scal, pr, pi, bnr, bni, hr, hi, tr, ti, mats, *,
                   nb, mm_dtype, beta, lam2, emit_w):
    N, M1, M2 = pr.shape
    assert N % nb == 0
    nblk = N // nb
    cand_rows = _cand_rows(nb, beta)
    fspec = _field_spec(nb, M1, M2)
    cspec = pl.BlockSpec((1, cand_rows, 128), lambda n: (n, 0, 0))
    sspec = pl.BlockSpec(memory_space=pltpu.MemorySpace.SMEM)
    mm_bytes = jnp.dtype(mm_dtype).itemsize
    n_out_planes = 6 if emit_w else 4
    fld = jax.ShapeDtypeStruct((N, M1, M2), jnp.float32)
    out_specs = [fspec] * 4 + [cspec] + ([fspec] * 2 if emit_w else [])
    out_shape = ([fld] * 4
                 + [jax.ShapeDtypeStruct((nblk, cand_rows, 128), jnp.float32)]
                 + ([fld] * 2 if emit_w else []))
    cost = pl.CostEstimate(flops=30 * N * M1 * M2 * (M1 + M2),
                           transcendentals=N * M1 * M2,
                           bytes_accessed=(6 + n_out_planes) * N * M1 * M2 * 4)
    return pl.pallas_call(
        functools.partial(_fused_kernel, mm_dtype, float(lam2), emit_w,
                          beta, cand_rows),
        grid=(nblk,),
        in_specs=[sspec] + [fspec] * 6 + _const_specs(M1, M2, with_t=True),
        out_specs=tuple(out_specs),
        out_shape=tuple(out_shape),
        compiler_params=pltpu.CompilerParams(
            dimension_semantics=("parallel",),
            vmem_limit_bytes=_vmem_limit(nb, M1, M2, 6 + n_out_planes, mm_bytes)),
        cost_estimate=cost,
    )(scal, pr, pi, bnr, bni, hr, hi, tr, ti, *mats)


# ----------------------------------------------------------------------------
# host-side constants + iteration driver
# ----------------------------------------------------------------------------
def dft_mats(M, mm_dtype):
    """Forward DFT matrix as the Gauss quadruple (F_r, F_i, F_r+F_i, F_r-F_i)."""
    k = np.arange(M)
    ang = -2.0 * np.pi * np.outer(k, k) / M
    fr, fi = np.cos(ang), np.sin(ang)
    return (jnp.asarray(fr, mm_dtype), jnp.asarray(fi, mm_dtype),
            jnp.asarray(fr + fi, mm_dtype), jnp.asarray(fr - fi, mm_dtype))


def build_consts(M1, M2, mm_dtype):
    return (*dft_mats(M1, mm_dtype), *dft_mats(M2, mm_dtype))


def _threshold(cand, beta):
    top, _ = jax.lax.top_k(cand.reshape(-1), beta)   # tiny candidate set only
    return jnp.min(top)


def spr_w_b_forward(x, Q, *, niter, lam, z, beta, nb=1, mm_dtype=jnp.float32):
    """x: (N, M1, M2, 2) real/imag pairs == the torch module's `input` (H)."""
    assert niter >= 1 and beta >= 1
    N, M1, M2, _ = x.shape
    assert N % nb == 0
    hr = x[..., 0].astype(jnp.float32)
    hi = x[..., 1].astype(jnp.float32)

    # T = exp(j * z / 6.37e-7 * Q)
    phase = (float(z) / 6.37e-07) * Q.astype(jnp.float32)
    tr, ti = jnp.cos(phase), jnp.sin(phase)
    mats = build_consts(M1, M2, mm_dtype)
    lam2 = float(lam) ** 2

    # --- iteration 0, stage 1 (specialised): W=1, P=0, Bn = fft2(H) ---
    bnr, bni, cand = spr_init(hr, hi, mats, nb=nb, mm_dtype=mm_dtype, beta=beta)
    pr = jnp.zeros((N, M1, M2), jnp.float32)
    pi = jnp.zeros_like(pr)
    if niter == 1:
        wr = jnp.ones((N, M1, M2), jnp.float32)
        wi = jnp.zeros_like(wr)
    else:
        wr = wi = None

    # --- fused stage2(i-1) + stage1(i) for i = 1..niter-1 ---
    for it in range(1, niter):
        thr2 = _threshold(cand, beta)
        scal = jnp.reshape(thr2.astype(jnp.float32), (1,))
        emit_w = it == niter - 1
        outs = spr_fused_step(scal, pr, pi, bnr, bni, hr, hi, tr, ti, mats,
                              nb=nb, mm_dtype=mm_dtype, beta=beta, lam2=lam2,
                              emit_w=emit_w)
        if emit_w:
            pr, pi, bnr, bni, cand, wr, wi = outs
        else:
            pr, pi, bnr, bni, cand = outs

    # --- final stage 2: only the masked aux_B is observable (the last aux_X is
    #     never returned by the torch module) -> pure elementwise mask.
    thr2 = _threshold(cand, beta)
    keep = (bnr * bnr + bni * bni) >= thr2
    bmr = jnp.where(keep, bnr, 0.0)
    bmi = jnp.where(keep, bni, 0.0)

    aux_W = jnp.stack([wr, wi], axis=-1)
    aux_B = jnp.stack([bmr, bmi], axis=-1)
    # NOTE: jnp.squeeze matches torch.squeeze (it also drops N when N == 1).
    return aux_W, jnp.squeeze(aux_B)


spr_w_b_forward_jit = jax.jit(
    spr_w_b_forward,
    static_argnames=("niter", "lam", "z", "beta", "nb", "mm_dtype"))


# ----------------------------------------------------------------------------
# pure-JAX references (validate DFT matmuls + the stage-2 algebra shortcut)
# ----------------------------------------------------------------------------
def _ref_fft_H(hr, hi):
    return jnp.fft.fft2((hr + 1j * hi).astype(jnp.complex64), axes=(-2, -1))


def _ref_fused(pr, pi, bnr, bni, hr, hi, tr, ti, thr2, lam2):
    """Un-shortcut reference for stage2(prev) + stage1(cur) (complex64 FFTs)."""
    P = (pr + 1j * pi).astype(jnp.complex64)
    Bn = (bnr + 1j * bni).astype(jnp.complex64)
    H = (hr + 1j * hi).astype(jnp.complex64)
    T = (tr + 1j * ti).astype(jnp.complex64)
    keep_b = (bnr * bnr + bni * bni) >= thr2
    Bm = Bn * keep_b
    Qc = jnp.fft.ifft2(P + Bn, axes=(-2, -1))                  # fft2(Qc) = P + Bn
    d = Qc - jnp.fft.ifft2(Bm, axes=(-2, -1))
    i1 = jnp.fft.ifft2(jnp.fft.fft2(d, axes=(-2, -1)) * jnp.conj(T)[None],
                       axes=(-2, -1))
    X = i1 * ((jnp.abs(i1) ** 2) > lam2)
    Pn = jnp.fft.fft2(X, axes=(-2, -1)) * T[None]
    conv = jnp.fft.ifft2(Pn, axes=(-2, -1))
    W0 = conv + jnp.fft.ifft2(Bm, axes=(-2, -1))
    W = W0 / jnp.maximum(jnp.abs(W0), 1e-18)
    Qn = H * W
    Bn_new = jnp.fft.fft2(Qn - conv, axes=(-2, -1))
    return Pn, Bn_new, W


if __name__ == "__main__":
    key = jax.random.PRNGKey(0)
    N, M1, M2 = 2, 16, 16            # small demo: batch=2, field 16x16
    niter, beta, lam = 3, 8, 0.1
    z = 2.0 * 6.37e-07               # -> phase = 2 * Q

    fy = jnp.fft.fftfreq(M1).astype(jnp.float32)
    fx = jnp.fft.fftfreq(M2).astype(jnp.float32)
    Q = (fy[:, None] ** 2 + fx[None, :] ** 2).astype(jnp.float32)

    k1, k2 = jax.random.split(key)
    x = jax.random.normal(k1, (N, M1, M2, 2), dtype=jnp.float32)

    phase = (z / 6.37e-07) * Q
    tr, ti = jnp.cos(phase), jnp.sin(phase)
    mats32 = build_consts(M1, M2, jnp.float32)

    # --- unit check 1: init kernel (Bn0 = fft2(H)) + exact candidate threshold
    hr, hi = x[..., 0], x[..., 1]
    bnr0, bni0, cand0 = spr_init(hr, hi, mats32, nb=1, mm_dtype=jnp.float32,
                                 beta=beta)
    ref_B0 = _ref_fft_H(hr, hi)
    np.testing.assert_allclose(np.asarray(bnr0 + 1j * bni0), np.asarray(ref_B0),
                               rtol=2e-3, atol=2e-3)
    thr2_k = _threshold(cand0, beta)
    thr2_ref = jnp.min(jax.lax.top_k((bnr0 * bnr0 + bni0 * bni0).reshape(-1),
                                     beta)[0])
    np.testing.assert_allclose(np.asarray(thr2_k), np.asarray(thr2_ref), rtol=1e-6)

    # --- unit check 2: fused kernel vs un-shortcut complex-FFT reference -----
    rnd = jax.random.normal(k2, (6, N, M1, M2), dtype=jnp.float32)
    pr_t, pi_t, bnr_t, bni_t, hr_t, hi_t = [rnd[i] for i in range(6)]
    # pick thr2 / lam2 with a data margin so masks cannot flip between the
    # matmul-DFT kernel and the complex-FFT reference
    mag_b = np.sort(np.asarray(bnr_t * bnr_t + bni_t * bni_t).reshape(-1))
    thr2_t = float(0.5 * (mag_b[-beta] + mag_b[-beta - 1]))
    _Bn = (bnr_t + 1j * bni_t).astype(jnp.complex64)
    _Bm = _Bn * ((bnr_t * bnr_t + bni_t * bni_t) >= thr2_t)
    _d = (jnp.fft.ifft2((pr_t + 1j * pi_t).astype(jnp.complex64) + _Bn,
                        axes=(-2, -1))
          - jnp.fft.ifft2(_Bm, axes=(-2, -1)))
    _i1 = jnp.fft.ifft2(jnp.fft.fft2(_d, axes=(-2, -1))
                        * jnp.conj((tr + 1j * ti).astype(jnp.complex64))[None],
                        axes=(-2, -1))
    s = np.sort(np.asarray(jnp.abs(_i1) ** 2).reshape(-1))
    lo, hi_idx = len(s) // 4, 3 * len(s) // 4
    g = lo + int(np.argmax(s[lo + 1:hi_idx] - s[lo:hi_idx - 1]))
    lam2_t = float(0.5 * (s[g] + s[g + 1]))

    scal_t = jnp.asarray([thr2_t], jnp.float32)
    P_ref, B_ref, W_ref = _ref_fused(pr_t, pi_t, bnr_t, bni_t, hr_t, hi_t,
                                     tr, ti, thr2_t, lam2_t)
    for nb_test in (1, 2):           # exercises both right-multiply paths
        outs = spr_fused_step(scal_t, pr_t, pi_t, bnr_t, bni_t, hr_t, hi_t,
                              tr, ti, mats32, nb=nb_test, mm_dtype=jnp.float32,
                              beta=beta, lam2=lam2_t, emit_w=True)
        prk, pik, bnrk, bnik, candk, wrk, wik = outs
        np.testing.assert_allclose(np.asarray(prk + 1j * pik), np.asarray(P_ref),
                                   rtol=3e-3, atol=3e-3)
        np.testing.assert_allclose(np.asarray(bnrk + 1j * bnik), np.asarray(B_ref),
                                   rtol=3e-3, atol=3e-3)
        np.testing.assert_allclose(np.asarray(wrk + 1j * wik), np.asarray(W_ref),
                                   rtol=3e-3, atol=3e-3)
        thr2_a = _threshold(candk, beta)
        thr2_b = jnp.min(jax.lax.top_k((bnrk * bnrk + bnik * bnik).reshape(-1),
                                       beta)[0])
        np.testing.assert_allclose(np.asarray(thr2_a), np.asarray(thr2_b),
                                   rtol=1e-6)

    # --- full forward pass: f32 matmuls (reference-accuracy path) ------------
    aux_W, aux_B = spr_w_b_forward_jit(x, Q, niter=niter, lam=lam, z=z,
                                       beta=beta, nb=1, mm_dtype=jnp.float32)
    jax.block_until_ready((aux_W, aux_B))
    assert aux_W.shape == (N, M1, M2, 2) and aux_B.shape == (N, M1, M2, 2)
    assert bool(jnp.all(jnp.isfinite(aux_W))) and bool(jnp.all(jnp.isfinite(aux_B)))
    nnz = int(jnp.sum(jnp.any(aux_B != 0.0, axis=-1)))
    assert 1 <= nnz <= 4 * beta       # top-beta sparsity actually happened

    # --- full forward pass: bf16 matmul operands (v6e/v7x MXU path) ----------
    aux_W16, aux_B16 = spr_w_b_forward_jit(x, Q, niter=niter, lam=lam, z=z,
                                           beta=beta, nb=2, mm_dtype=jnp.bfloat16)
    jax.block_until_ready((aux_W16, aux_B16))
    assert bool(jnp.all(jnp.isfinite(aux_W16))) and bool(jnp.all(jnp.isfinite(aux_B16)))

    print("KERNEL_OK")
</pallas_src>

<mosaic_0001>
module attributes {stable_mosaic.version = 11 : i64} {
  func.func @_init_kernel(%arg0: i32, %arg1: memref<1x16x16xf32, #tpu.memory_space<vmem>>, %arg2: memref<1x16x16xf32, #tpu.memory_space<vmem>>, %arg3: memref<16x16xf32, #tpu.memory_space<vmem>>, %arg4: memref<16x16xf32, #tpu.memory_space<vmem>>, %arg5: memref<16x16xf32, #tpu.memory_space<vmem>>, %arg6: memref<16x16xf32, #tpu.memory_space<vmem>>, %arg7: memref<16x16xf32, #tpu.memory_space<vmem>>, %arg8: memref<16x16xf32, #tpu.memory_space<vmem>>, %arg9: memref<16x16xf32, #tpu.memory_space<vmem>>, %arg10: memref<16x16xf32, #tpu.memory_space<vmem>>, %arg11: memref<1x16x16xf32, #tpu.memory_space<vmem>>, %arg12: memref<1x16x16xf32, #tpu.memory_space<vmem>>, %arg13: memref<1x8x128xf32, #tpu.memory_space<vmem>>) attributes {dimension_semantics = [#tpu.dimension_semantics<parallel>], iteration_bounds = array<i64: 2>, scalar_prefetch = 0 : i64, scratch_operands = 0 : i64, tpu.core_type = #tpu.core_type<tc>, window_params = [{transform_indices = @transform_0, window_bounds = array<i64: 1, 16, 16>}, {transform_indices = @transform_1, window_bounds = array<i64: 1, 16, 16>}, {pipeline_mode = #tpu.pipeline_mode<synchronous>, transform_indices = @transform_2, window_bounds = array<i64: 16, 16>}, {pipeline_mode = #tpu.pipeline_mode<synchronous>, transform_indices = @transform_3, window_bounds = array<i64: 16, 16>}, {pipeline_mode = #tpu.pipeline_mode<synchronous>, transform_indices = @transform_4, window_bounds = array<i64: 16, 16>}, {pipeline_mode = #tpu.pipeline_mode<synchronous>, transform_indices = @transform_5, window_bounds = array<i64: 16, 16>}, {pipeline_mode = #tpu.pipeline_mode<synchronous>, transform_indices = @transform_6, window_bounds = array<i64: 16, 16>}, {pipeline_mode = #tpu.pipeline_mode<synchronous>, transform_indices = @transform_7, window_bounds = array<i64: 16, 16>}, {pipeline_mode = #tpu.pipeline_mode<synchronous>, transform_indices = @transform_8, window_bounds = array<i64: 16, 16>}, {pipeline_mode = #tpu.pipeline_mode<synchronous>, transform_indices = @transform_9, window_bounds = array<i64: 16, 16>}, {transform_indices = @transform_10, window_bounds = array<i64: 1, 16, 16>}, {transform_indices = @transform_11, window_bounds = array<i64: 1, 16, 16>}, {transform_indices = @transform_12, window_bounds = array<i64: 1, 8, 128>}]} {
    %c0 = arith.constant 0 : index
    %c0_0 = arith.constant 0 : index
    %0 = vector.load %arg3[%c0, %c0_0] : memref<16x16xf32, #tpu.memory_space<vmem>>, vector<16x16xf32>
    %c0_1 = arith.constant 0 : index
    %c0_2 = arith.constant 0 : index
    %1 = vector.load %arg4[%c0_1, %c0_2] : memref<16x16xf32, #tpu.memory_space<vmem>>, vector<16x16xf32>
    %c0_3 = arith.constant 0 : index
    %c0_4 = arith.constant 0 : index
    %2 = vector.load %arg5[%c0_3, %c0_4] : memref<16x16xf32, #tpu.memory_space<vmem>>, vector<16x16xf32>
    %c0_5 = arith.constant 0 : index
    %c0_6 = arith.constant 0 : index
    %3 = vector.load %arg7[%c0_5, %c0_6] : memref<16x16xf32, #tpu.memory_space<vmem>>, vector<16x16xf32>
    %c0_7 = arith.constant 0 : index
    %c0_8 = arith.constant 0 : index
    %4 = vector.load %arg8[%c0_7, %c0_8] : memref<16x16xf32, #tpu.memory_space<vmem>>, vector<16x16xf32>
    %c0_9 = arith.constant 0 : index
    %c0_10 = arith.constant 0 : index
    %5 = vector.load %arg9[%c0_9, %c0_10] : memref<16x16xf32, #tpu.memory_space<vmem>>, vector<16x16xf32>
    %c0_11 = arith.constant 0 : index
    %c0_12 = arith.constant 0 : index
    %c0_13 = arith.constant 0 : index
    %6 = vector.load %arg1[%c0_11, %c0_12, %c0_13] : memref<1x16x16xf32, #tpu.memory_space<vmem>>, vector<1x16x16xf32>
    %c0_14 = arith.constant 0 : index
    %c0_15 = arith.constant 0 : index
    %c0_16 = arith.constant 0 : index
    %7 = vector.load %arg2[%c0_14, %c0_15, %c0_16] : memref<1x16x16xf32, #tpu.memory_space<vmem>>, vector<1x16x16xf32>
    %8 = vector.shape_cast %6 : vector<1x16x16xf32> to vector<16x16xf32>
    %9 = vector.shape_cast %7 : vector<1x16x16xf32> to vector<16x16xf32>
    %10 = arith.addf %8, %9 : vector<16x16xf32>
    %cst = arith.constant dense<0.000000e+00> : vector<16x16xf32>
    %11 = tpu.matmul %0, %8, %cst {dimension_numbers = #tpu.dot_dimension_numbers<[1], [0], [0], [1], [0, 0, 1, 1], [], []>} : vector<16x16xf32>, vector<16x16xf32>, vector<16x16xf32> -> vector<16x16xf32>
    %cst_17 = arith.constant dense<0.000000e+00> : vector<16x16xf32>
    %12 = tpu.matmul %1, %9, %cst_17 {dimension_numbers = #tpu.dot_dimension_numbers<[1], [0], [0], [1], [0, 0, 1, 1], [], []>} : vector<16x16xf32>, vector<16x16xf32>, vector<16x16xf32> -> vector<16x16xf32>
    %cst_18 = arith.constant dense<0.000000e+00> : vector<16x16xf32>
    %13 = tpu.matmul %2, %10, %cst_18 {dimension_numbers = #tpu.dot_dimension_numbers<[1], [0], [0], [1], [0, 0, 1, 1], [], []>} : vector<16x16xf32>, vector<16x16xf32>, vector<16x16xf32> -> vector<16x16xf32>
    %14 = arith.subf %11, %12 : vector<16x16xf32>
    %15 = arith.subf %13, %11 : vector<16x16xf32>
    %16 = arith.subf %15, %12 : vector<16x16xf32>
    %17 = arith.addf %14, %16 : vector<16x16xf32>
    %cst_19 = arith.constant dense<0.000000e+00> : vector<16x16xf32>
    %18 = tpu.matmul %14, %3, %cst_19 {dimension_numbers = #tpu.dot_dimension_numbers<[1], [0], [0], [1], [0, 0, 1, 1], [], []>} : vector<16x16xf32>, vector<16x16xf32>, vector<16x16xf32> -> vector<16x16xf32>
    %cst_20 = arith.constant dense<0.000000e+00> : vector<16x16xf32>
    %19 = tpu.matmul %16, %4, %cst_20 {dimension_numbers = #tpu.dot_dimension_numbers<[1], [0], [0], [1], [0, 0, 1, 1], [], []>} : vector<16x16xf32>, vector<16x16xf32>, vector<16x16xf32> -> vector<16x16xf32>
    %cst_21 = arith.constant dense<0.000000e+00> : vector<16x16xf32>
    %20 = tpu.matmul %17, %5, %cst_21 {dimension_numbers = #tpu.dot_dimension_numbers<[1], [0], [0], [1], [0, 0, 1, 1], [], []>} : vector<16x16xf32>, vector<16x16xf32>, vector<16x16xf32> -> vector<16x16xf32>
    %21 = arith.subf %18, %19 : vector<16x16xf32>
    %22 = arith.subf %20, %18 : vector<16x16xf32>
    %23 = arith.subf %22, %19 : vector<16x16xf32>
    %24 = vector.shape_cast %21 : vector<16x16xf32> to vector<1x16x16xf32>
    %25 = vector.shape_cast %23 : vector<16x16xf32> to vector<1x16x16xf32>
    %c0_22 = arith.constant 0 : index
    %c0_23 = arith.constant 0 : index
    %c0_24 = arith.constant 0 : index
    %26 = vector.load %arg11[%c0_22, %c0_23, %c0_24] : memref<1x16x16xf32, #tpu.memory_space<vmem>>, vector<1x16x16xf32>
    tpu.vector_store %arg11[%c0_22, %c0_23, %c0_24], %24 {strides = array<i32>} : memref<1x16x16xf32, #tpu.memory_space<vmem>>, vector<1x16x16xf32>,
    %c0_25 = arith.constant 0 : index
    %c0_26 = arith.constant 0 : index
    %c0_27 = arith.constant 0 : index
    %27 = vector.load %arg12[%c0_25, %c0_26, %c0_27] : memref<1x16x16xf32, #tpu.memory_space<vmem>>, vector<1x16x16xf32>
    tpu.vector_store %arg12[%c0_25, %c0_26, %c0_27], %25 {strides = array<i32>} : memref<1x16x16xf32, #tpu.memory_space<vmem>>, vector<1x16x16xf32>,
    %28 = vector.shape_cast %24 : vector<1x16x16xf32> to vector<16x16xf32>
    %29 = vector.shape_cast %24 : vector<1x16x16xf32> to vector<16x16xf32>
    %30 = arith.mulf %28, %29 : vector<16x16xf32>
    %31 = vector.shape_cast %25 : vector<1x16x16xf32> to vector<16x16xf32>
    %32 = vector.shape_cast %25 : vector<1x16x16xf32> to vector<16x16xf32>
    %33 = arith.mulf %31, %32 : vector<16x16xf32>
    %34 = arith.addf %30, %33 : vector<16x16xf32>
    %35 = tpu.iota {dimensions = array<i32: 0>} : vector<16x16xi32>
    %c16_i32 = arith.constant 16 : i32
    %36 = vector.broadcast %c16_i32 : i32 to vector<16x16xi32>
    %37 = arith.muli %35, %36 : vector<16x16xi32>
    %38 = tpu.iota {dimensions = array<i32: 1>} : vector<16x16xi32>
    %39 = arith.addi %37, %38 : vector<16x16xi32>
    %40 = vector.shape_cast %34 : vector<16x16xf32> to vector<1x16x16xf32>
    %cst_28 = arith.constant dense<0xFF800000> : vector<1xf32>
    %41 = vector.multi_reduction <maximumf>, %40, %cst_28 [1, 2] : vector<1x16x16xf32> to vector<1xf32>
    %42 = vector.shape_cast %41 : vector<1xf32> to vector<1x1x1xf32>
    %43 = vector.extract %42[0, 0, 0] : f32 from vector<1x1x1xf32>
    %44 = vector.broadcast %43 : f32 to vector<16x16xf32>
    %45 = arith.cmpf oeq, %34, %44 : vector<16x16xf32>
    %c256_i32 = arith.constant 256 : i32
    %46 = vector.broadcast %c256_i32 : i32 to vector<16x16xi32>
    %47 = arith.select %45, %39, %46 : vector<16x16xi1>, vector<16x16xi32>
    %48 = vector.shape_cast %47 : vector<16x16xi32> to vector<1x16x16xi32>
    %cst_29 = arith.constant dense<2147483647> : vector<1xi32>
    %49 = vector.multi_reduction <minsi>, %48, %cst_29 [1, 2] : vector<1x16x16xi32> to vector<1xi32>
    %50 = vector.shape_cast %49 : vector<1xi32> to vector<1x1x1xi32>
    %51 = vector.extract %50[0, 0, 0] : i32 from vector<1x1x1xi32>
    %52 = vector.broadcast %51 : i32 to vector<16x16xi32>
    %53 = arith.cmpi eq, %39, %52 : vector<16x16xi32>
    %cst_30 = arith.constant -1.000000e+00 : f32
    %54 = vector.broadcast %cst_30 : f32 to vector<16x16xf32>
    %55 = arith.select %53, %54, %34 : vector<16x16xi1>, vector<16x16xf32>
    %56 = vector.shape_cast %55 : vector<16x16xf32> to vector<1x16x16xf32>
    %cst_31 = arith.constant dense<0xFF800000> : vector<1xf32>
    %57 = vector.multi_reduction <maximumf>, %56, %cst_31 [1, 2] : vector<1x16x16xf32> to vector<1xf32>
    %58 = vector.shape_cast %57 : vector<1xf32> to vector<1x1x1xf32>
    %59 = vector.extract %58[0, 0, 0] : f32 from vector<1x1x1xf32>
    %60 = vector.broadcast %59 : f32 to vector<16x16xf32>
    %61 = arith.cmpf oeq, %55, %60 : vector<16x16xf32>
    %c256_i32_32 = arith.constant 256 : i32
    %62 = vector.broadcast %c256_i32_32 : i32 to vector<16x16xi32>
    %63 = arith.select %61, %39, %62 : vector<16x16xi1>, vector<16x16xi32>
    %64 = vector.shape_cast %63 : vector<16x16xi32> to vector<1x16x16xi32>
    %cst_33 = arith.constant dense<2147483647> : vector<1xi32>
    %65 = vector.multi_reduction <minsi>, %64, %cst_33 [1, 2] : vector<1x16x16xi32> to vector<1xi32>
    %66 = vector.shape_cast %65 : vector<1xi32> to vector<1x1x1xi32>
    %67 = vector.extract %66[0, 0, 0] : i32 from vector<1x1x1xi32>
    %68 = vector.broadcast %67 : i32 to vector<16x16xi32>
    %69 = arith.cmpi eq, %39, %68 : vector<16x16xi32>
    %cst_34 = arith.constant -1.000000e+00 : f32
    %70 = vector.broadcast %cst_34 : f32 to vector<16x16xf32>
    %71 = arith.select %69, %70, %55 : vector<16x16xi1>, vector<16x16xf32>
    %72 = vector.shape_cast %71 : vector<16x16xf32> to vector<1x16x16xf32>
    %cst_35 = arith.constant dense<0xFF800000> : vector<1xf32>
    %73 = vector.multi_reduction <maximumf>, %72, %cst_35 [1, 2] : vector<1x16x16xf32> to vector<1xf32>
    %74 = vector.shape_cast %73 : vector<1xf32> to vector<1x1x1xf32>
    %75 = vector.extract %74[0, 0, 0] : f32 from vector<1x1x1xf32>
    %76 = vector.broadcast %75 : f32 to vector<16x16xf32>
    %77 = arith.cmpf oeq, %71, %76 : vector<16x16xf32>
    %c256_i32_36 = arith.constant 256 : i32
    %78 = vector.broadcast %c256_i32_36 : i32 to vector<16x16xi32>
    %79 = arith.select %77, %39, %78 : vector<16x16xi1>, vector<16x16xi32>
    %80 = vector.shape_cast %79 : vector<16x16xi32> to vector<1x16x16xi32>
    %cst_37 = arith.constant dense<2147483647> : vector<1xi32>
    %81 = vector.multi_reduction <minsi>, %80, %cst_37 [1, 2] : vector<1x16x16xi32> to vector<1xi32>
    %82 = vector.shape_cast %81 : vector<1xi32> to vector<1x1x1xi32>
    %83 = vector.extract %82[0, 0, 0] : i32 from vector<1x1x1xi32>
    %84 = vector.broadcast %83 : i32 to vector<16x16xi32>
    %85 = arith.cmpi eq, %39, %84 : vector<16x16xi32>
    %cst_38 = arith.constant -1.000000e+00 : f32
    %86 = vector.broadcast %cst_38 : f32 to vector<16x16xf32>
    %87 = arith.select %85, %86, %71 : vector<16x16xi1>, vector<16x16xf32>
    %88 = vector.shape_cast %87 : vector<16x16xf32> to vector<1x16x16xf32>
    %cst_39 = arith.constant dense<0xFF800000> : vector<1xf32>
    %89 = vector.multi_reduction <maximumf>, %88, %cst_39 [1, 2] : vector<1x16x16xf32> to vector<1xf32>
    %90 = vector.shape_cast %89 : vector<1xf32> to vector<1x1x1xf32>
    %91 = vector.extract %90[0, 0, 0] : f32 from vector<1x1x1xf32>
    %92 = vector.broadcast %91 : f32 to vector<16x16xf32>
    %93 = arith.cmpf oeq, %87, %92 : vector<16x16xf32>
    %c256_i32_40 = arith.constant 256 : i32
    %94 = vector.broadcast %c256_i32_40 : i32 to vector<16x16xi32>
    %95 = arith.select %93, %39, %94 : vector<16x16xi1>, vector<16x16xi32>
    %96 = vector.shape_cast %95 : vector<16x16xi32> to vector<1x16x16xi32>
    %cst_41 = arith.constant dense<2147483647> : vector<1xi32>
    %97 = vector.multi_reduction <minsi>, %96, %cst_41 [1, 2] : vector<1x16x16xi32> to vector<1xi32>
    %98 = vector.shape_cast %97 : vector<1xi32> to vector<1x1x1xi32>
    %99 = vector.extract %98[0, 0, 0] : i32 from vector<1x1x1xi32>
    %100 = vector.broadcast %99 : i32 to vector<16x16xi32>
    %101 = arith.cmpi eq, %39, %100 : vector<16x16xi32>
    %cst_42 = arith.constant -1.000000e+00 : f32
    %102 = vector.broadcast %cst_42 : f32 to vector<16x16xf32>
    %103 = arith.select %101, %102, %87 : vector<16x16xi1>, vector<16x16xf32>
    %104 = vector.shape_cast %103 : vector<16x16xf32> to vector<1x16x16xf32>
    %cst_43 = arith.constant dense<0xFF800000> : vector<1xf32>
    %105 = vector.multi_reduction <maximumf>, %104, %cst_43 [1, 2] : vector<1x16x16xf32> to vector<1xf32>
    %106 = vector.shape_cast %105 : vector<1xf32> to vector<1x1x1xf32>
    %107 = vector.extract %106[0, 0, 0] : f32 from vector<1x1x1xf32>
    %108 = vector.broadcast %107 : f32 to vector<16x16xf32>
    %109 = arith.cmpf oeq, %103, %108 : vector<16x16xf32>
    %c256_i32_44 = arith.constant 256 : i32
    %110 = vector.broadcast %c256_i32_44 : i32 to vector<16x16xi32>
    %111 = arith.select %109, %39, %110 : vector<16x16xi1>, vector<16x16xi32>
    %112 = vector.shape_cast %111 : vector<16x16xi32> to vector<1x16x16xi32>
    %cst_45 = arith.constant dense<2147483647> : vector<1xi32>
    %113 = vector.multi_reduction <minsi>, %112, %cst_45 [1, 2] : vector<1x16x16xi32> to vector<1xi32>
    %114 = vector.shape_cast %113 : vector<1xi32> to vector<1x1x1xi32>
    %115 = vector.extract %114[0, 0, 0] : i32 from vector<1x1x1xi32>
    %116 = vector.broadcast %115 : i32 to vector<16x16xi32>
    %117 = arith.cmpi eq, %39, %116 : vector<16x16xi32>
    %cst_46 = arith.constant -1.000000e+00 : f32
    %118 = vector.broadcast %cst_46 : f32 to vector<16x16xf32>
    %119 = arith.select %117, %118, %103 : vector<16x16xi1>, vector<16x16xf32>
    %120 = vector.shape_cast %119 : vector<16x16xf32> to vector<1x16x16xf32>
    %cst_47 = arith.constant dense<0xFF800000> : vector<1xf32>
    %121 = vector.multi_reduction <maximumf>, %120, %cst_47 [1, 2] : vector<1x16x16xf32> to vector<1xf32>
    %122 = vector.shape_cast %121 : vector<1xf32> to vector<1x1x1xf32>
    %123 = vector.extract %122[0, 0, 0] : f32 from vector<1x1x1xf32>
    %124 = vector.broadcast %123 : f32 to vector<16x16xf32>
    %125 = arith.cmpf oeq, %119, %124 : vector<16x16xf32>
    %c256_i32_48 = arith.constant 256 : i32
    %126 = vector.broadcast %c256_i32_48 : i32 to vector<16x16xi32>
    %127 = arith.select %125, %39, %126 : vector<16x16xi1>, vector<16x16xi32>
    %128 = vector.shape_cast %127 : vector<16x16xi32> to vector<1x16x16xi32>
    %cst_49 = arith.constant dense<2147483647> : vector<1xi32>
    %129 = vector.multi_reduction <minsi>, %128, %cst_49 [1, 2] : vector<1x16x16xi32> to vector<1xi32>
    %130 = vector.shape_cast %129 : vector<1xi32> to vector<1x1x1xi32>
    %131 = vector.extract %130[0, 0, 0] : i32 from vector<1x1x1xi32>
    %132 = vector.broadcast %131 : i32 to vector<16x16xi32>
    %133 = arith.cmpi eq, %39, %132 : vector<16x16xi32>
    %cst_50 = arith.constant -1.000000e+00 : f32
    %134 = vector.broadcast %cst_50 : f32 to vector<16x16xf32>
    %135 = arith.select %133, %134, %119 : vector<16x16xi1>, vector<16x16xf32>
    %136 = vector.shape_cast %135 : vector<16x16xf32> to vector<1x16x16xf32>
    %cst_51 = arith.constant dense<0xFF800000> : vector<1xf32>
    %137 = vector.multi_reduction <maximumf>, %136, %cst_51 [1, 2] : vector<1x16x16xf32> to vector<1xf32>
    %138 = vector.shape_cast %137 : vector<1xf32> to vector<1x1x1xf32>
    %139 = vector.extract %138[0, 0, 0] : f32 from vector<1x1x1xf32>
    %140 = vector.broadcast %139 : f32 to vector<16x16xf32>
    %141 = arith.cmpf oeq, %135, %140 : vector<16x16xf32>
    %c256_i32_52 = arith.constant 256 : i32
    %142 = vector.broadcast %c256_i32_52 : i32 to vector<16x16xi32>
    %143 = arith.select %141, %39, %142 : vector<16x16xi1>, vector<16x16xi32>
    %144 = vector.shape_cast %143 : vector<16x16xi32> to vector<1x16x16xi32>
    %cst_53 = arith.constant dense<2147483647> : vector<1xi32>
    %145 = vector.multi_reduction <minsi>, %144, %cst_53 [1, 2] : vector<1x16x16xi32> to vector<1xi32>
    %146 = vector.shape_cast %145 : vector<1xi32> to vector<1x1x1xi32>
    %147 = vector.extract %146[0, 0, 0] : i32 from vector<1x1x1xi32>
    %148 = vector.broadcast %147 : i32 to vector<16x16xi32>
    %149 = arith.cmpi eq, %39, %148 : vector<16x16xi32>
    %cst_54 = arith.constant -1.000000e+00 : f32
    %150 = vector.broadcast %cst_54 : f32 to vector<16x16xf32>
    %151 = arith.select %149, %150, %135 : vector<16x16xi1>, vector<16x16xf32>
    %152 = vector.shape_cast %151 : vector<16x16xf32> to vector<1x16x16xf32>
    %cst_55 = arith.constant dense<0xFF800000> : vector<1xf32>
    %153 = vector.multi_reduction <maximumf>, %152, %cst_55 [1, 2] : vector<1x16x16xf32> to vector<1xf32>
    %154 = vector.shape_cast %153 : vector<1xf32> to vector<1x1x1xf32>
    %155 = vector.extract %154[0, 0, 0] : f32 from vector<1x1x1xf32>
    %156 = tpu.iota {dimensions = array<i32: 0>} : vector<8x128xi32>
    %c128_i32 = arith.constant 128 : i32
    %157 = vector.broadcast %c128_i32 : i32 to vector<8x128xi32>
    %158 = arith.muli %156, %157 : vector<8x128xi32>
    %159 = tpu.iota {dimensions = array<i32: 1>} : vector<8x128xi32>
    %160 = arith.addi %158, %159 : vector<8x128xi32>
    %cst_56 = arith.constant -1.000000e+00 : f32
    %161 = vector.broadcast %cst_56 : f32 to vector<8x128xf32>
    %c0_i32 = arith.constant 0 : i32
    %162 = vector.broadcast %c0_i32 : i32 to vector<8x128xi32>
    %163 = arith.cmpi eq, %160, %162 : vector<8x128xi32>
    %164 = vector.broadcast %43 : f32 to vector<8x128xf32>
    %165 = arith.select %163, %164, %161 : vector<8x128xi1>, vector<8x128xf32>
    %c1_i32 = arith.constant 1 : i32
    %166 = vector.broadcast %c1_i32 : i32 to vector<8x128xi32>
    %167 = arith.cmpi eq, %160, %166 : vector<8x128xi32>
    %168 = vector.broadcast %59 : f32 to vector<8x128xf32>
    %169 = arith.select %167, %168, %165 : vector<8x128xi1>, vector<8x128xf32>
    %c2_i32 = arith.constant 2 : i32
    %170 = vector.broadcast %c2_i32 : i32 to vector<8x128xi32>
    %171 = arith.cmpi eq, %160, %170 : vector<8x128xi32>
    %172 = vector.broadcast %75 : f32 to vector<8x128xf32>
    %173 = arith.select %171, %172, %169 : vector<8x128xi1>, vector<8x128xf32>
    %c3_i32 = arith.constant 3 : i32
    %174 = vector.broadcast %c3_i32 : i32 to vector<8x128xi32>
    %175 = arith.cmpi eq, %160, %174 : vector<8x128xi32>
    %176 = vector.broadcast %91 : f32 to vector<8x128xf32>
    %177 = arith.select %175, %176, %173 : vector<8x128xi1>, vector<8x128xf32>
    %c4_i32 = arith.constant 4 : i32
    %178 = vector.broadcast %c4_i32 : i32 to vector<8x128xi32>
    %179 = arith.cmpi eq, %160, %178 : vector<8x128xi32>
    %180 = vector.broadcast %107 : f32 to vector<8x128xf32>
    %181 = arith.select %179, %180, %177 : vector<8x128xi1>, vector<8x128xf32>
    %c5_i32 = arith.constant 5 : i32
    %182 = vector.broadcast %c5_i32 : i32 to vector<8x128xi32>
    %183 = arith.cmpi eq, %160, %182 : vector<8x128xi32>
    %184 = vector.broadcast %123 : f32 to vector<8x128xf32>
    %185 = arith.select %183, %184, %181 : vector<8x128xi1>, vector<8x128xf32>
    %c6_i32 = arith.constant 6 : i32
    %186 = vector.broadcast %c6_i32 : i32 to vector<8x128xi32>
    %187 = arith.cmpi eq, %160, %186 : vector<8x128xi32>
    %188 = vector.broadcast %139 : f32 to vector<8x128xf32>
    %189 = arith.select %187, %188, %185 : vector<8x128xi1>, vector<8x128xf32>
    %c7_i32 = arith.constant 7 : i32
    %190 = vector.broadcast %c7_i32 : i32 to vector<8x128xi32>
    %191 = arith.cmpi eq, %160, %190 : vector<8x128xi32>
    %192 = vector.broadcast %155 : f32 to vector<8x128xf32>
    %193 = arith.select %191, %192, %189 : vector<8x128xi1>, vector<8x128xf32>
    %194 = vector.shape_cast %193 : vector<8x128xf32> to vector<1x8x128xf32>
    %c0_57 = arith.constant 0 : index
    %c0_58 = arith.constant 0 : index
    %c0_59 = arith.constant 0 : index
    %195 = vector.load %arg13[%c0_57, %c0_58, %c0_59] : memref<1x8x128xf32, #tpu.memory_space<vmem>>, vector<1x8x128xf32>
    tpu.vector_store %arg13[%c0_57, %c0_58, %c0_59], %194 {strides = array<i32>} : memref<1x8x128xf32, #tpu.memory_space<vmem>>, vector<1x8x128xf32>,
    return
  }
  func.func @transform_0(%arg0: i32) -> (i32, i32, i32) {
    %c0_i32 = arith.constant 0 : i32
    %c0_i32_0 = arith.constant 0 : i32
    %c0_i32_1 = arith.constant 0 : i32
    return %arg0, %c0_i32, %c0_i32_0 : i32, i32, i32
  }
  func.func @transform_1(%arg0: i32) -> (i32, i32, i32) {
    %c0_i32 = arith.constant 0 : i32
    %c0_i32_0 = arith.constant 0 : i32
    %c0_i32_1 = arith.constant 0 : i32
    return %arg0, %c0_i32, %c0_i32_0 : i32, i32, i32
  }
  func.func @transform_2(%arg0: i32) -> (i32, i32) {
    %c0_i32 = arith.constant 0 : i32
    %c0_i32_0 = arith.constant 0 : i32
    %c0_i32_1 = arith.constant 0 : i32
    return %c0_i32, %c0_i32_0 : i32, i32
  }
  func.func @transform_3(%arg0: i32) -> (i32, i32) {
    %c0_i32 = arith.constant 0 : i32
    %c0_i32_0 = arith.constant 0 : i32
    %c0_i32_1 = arith.constant 0 : i32
    return %c0_i32, %c0_i32_0 : i32, i32
  }
  func.func @transform_4(%arg0: i32) -> (i32, i32) {
    %c0_i32 = arith.constant 0 : i32
    %c0_i32_0 = arith.constant 0 : i32
    %c0_i32_1 = arith.constant 0 : i32
    return %c0_i32, %c0_i32_0 : i32, i32
  }
  func.func @transform_5(%arg0: i32) -> (i32, i32) {
    %c0_i32 = arith.constant 0 : i32
    %c0_i32_0 = arith.constant 0 : i32
    %c0_i32_1 = arith.constant 0 : i32
    return %c0_i32, %c0_i32_0 : i32, i32
  }
  func.func @transform_6(%arg0: i32) -> (i32, i32) {
    %c0_i32 = arith.constant 0 : i32
    %c0_i32_0 = arith.constant 0 : i32
    %c0_i32_1 = arith.constant 0 : i32
    return %c0_i32, %c0_i32_0 : i32, i32
  }
  func.func @transform_7(%arg0: i32) -> (i32, i32) {
    %c0_i32 = arith.constant 0 : i32
    %c0_i32_0 = arith.constant 0 : i32
    %c0_i32_1 = arith.constant 0 : i32
    return %c0_i32, %c0_i32_0 : i32, i32
  }
  func.func @transform_8(%arg0: i32) -> (i32, i32) {
    %c0_i32 = arith.constant 0 : i32
    %c0_i32_0 = arith.constant 0 : i32
    %c0_i32_1 = arith.constant 0 : i32
    return %c0_i32, %c0_i32_0 : i32, i32
  }
  func.func @transform_9(%arg0: i32) -> (i32, i32) {
    %c0_i32 = arith.constant 0 : i32
    %c0_i32_0 = arith.constant 0 : i32
    %c0_i32_1 = arith.constant 0 : i32
    return %c0_i32, %c0_i32_0 : i32, i32
  }
  func.func @transform_10(%arg0: i32) -> (i32, i32, i32) {
    %c0_i32 = arith.constant 0 : i32
    %c0_i32_0 = arith.constant 0 : i32
    %c0_i32_1 = arith.constant 0 : i32
    return %arg0, %c0_i32, %c0_i32_0 : i32, i32, i32
  }
  func.func @transform_11(%arg0: i32) -> (i32, i32, i32) {
    %c0_i32 = arith.constant 0 : i32
    %c0_i32_0 = arith.constant 0 : i32
    %c0_i32_1 = arith.constant 0 : i32
    return %arg0, %c0_i32, %c0_i32_0 : i32, i32, i32
  }
  func.func @transform_12(%arg0: i32) -> (i32, i32, i32) {
    %c0_i32 = arith.constant 0 : i32
    %c0_i32_0 = arith.constant 0 : i32
    %c0_i32_1 = arith.constant 0 : i32
    return %arg0, %c0_i32, %c0_i32_0 : i32, i32, i32
  }
}

</mosaic_0001>

<llo_original>
// kernel: tpu_custom_call.1
$region0: #{tpu_custom_call.1}
  #allocation0 [shape = 'u32[]', space=smem, size = 0x4, offset = 0x4, fixed_abs, tag = 'smem constant byte address 0x4 - core index']
  #allocation1 [shape = 'u32[144,128]{1,0:T(1,128)}', space=vmem, size = 0x12000, scoped, tag = 'internal scratch']
  %s0 = inlined_call_operand.hbm [shape: f32[2,16,16], index: 0, kind: input, shape index: {}]
  %s1 = inlined_call_operand.hbm [shape: f32[2,16,16], index: 1, kind: input, shape index: {}]
  %s2 = inlined_call_operand.hbm [shape: f32[16,16], index: 2, kind: input, shape index: {}]
  %s3 = inlined_call_operand.hbm [shape: f32[16,16], index: 3, kind: input, shape index: {}]
  %s4 = inlined_call_operand.hbm [shape: f32[16,16], index: 4, kind: input, shape index: {}]
  %s5 = inlined_call_operand.hbm [shape: f32[16,16], index: 5, kind: input, shape index: {}]
  %s6 = inlined_call_operand.hbm [shape: f32[16,16], index: 6, kind: input, shape index: {}]
  %s7 = inlined_call_operand.hbm [shape: f32[16,16], index: 7, kind: input, shape index: {}]
  %s8 = inlined_call_operand.hbm [shape: f32[16,16], index: 8, kind: input, shape index: {}]
  %s9 = inlined_call_operand.vmem [shape: f32[16,16], index: 9, kind: input, shape index: {}]
  %s10 = inlined_call_operand.hbm [shape: f32[2,16,16], index: 10, kind: output, shape index: {0}]
  %s11 = inlined_call_operand.hbm [shape: f32[2,16,16], index: 11, kind: output, shape index: {1}]
  %s12 = inlined_call_operand.hbm [shape: f32[2,8,128], index: 12, kind: output, shape index: {2}]
  %13 = xla_tuple %s10, %s11, %s12
  %s14 = sld [smem:[#allocation0]]
  $region125: #{tpu_custom_call.1} parent=0
    _
  %s16 = ssub.s32 1, %s14
  %s17 = scalar_select 0, %s16, %s14
  $region1: #{tpu_custom_call.1} parent=0
    #allocation2 [shape = 'u8[16384]{0}', space=vmem, size = 0x4000, scoped, tag = 'input window, operand 0']
    #allocation3 [shape = 's32[2]{0}', space=sflag, size = 0x8, scoped, tag = 'scoped memory for tpu_custom_call.1']
    #allocation4 [shape = 's32[2]{0}', space=sflag, size = 0x8, scoped, tag = 'scoped memory for tpu_custom_call.1']
    #allocation5 [shape = 'u8[16384]{0}', space=vmem, size = 0x4000, scoped, tag = 'input window, operand 1']
    #allocation6 [shape = 's32[2]{0}', space=sflag, size = 0x8, scoped, tag = 'scoped memory for tpu_custom_call.1']
    #allocation7 [shape = 'u8[8192]{0}', space=vmem, size = 0x2000, scoped, tag = 'input window, operand 2, single buffered']
    #allocation8 [shape = 'u8[8192]{0}', space=vmem, size = 0x2000, scoped, tag = 'input window, operand 3, single buffered']
    #allocation9 [shape = 's32[1]{0}', space=sflag, size = 0x4, scoped, tag = 'scoped memory for tpu_custom_call.1']
    #allocation10 [shape = 'u8[8192]{0}', space=vmem, size = 0x2000, scoped, tag = 'input window, operand 4, single buffered']
    #allocation11 [shape = 'u8[8192]{0}', space=vmem, size = 0x2000, scoped, tag = 'input window, operand 5, single buffered']
    #allocation12 [shape = 's32[1]{0}', space=sflag, size = 0x4, scoped, tag = 'scoped memory for tpu_custom_call.1']
    #allocation13 [shape = 'u8[8192]{0}', space=vmem, size = 0x2000, scoped, tag = 'input window, operand 6, single buffered']
    #allocation14 [shape = 'u8[8192]{0}', space=vmem, size = 0x2000, scoped, tag = 'input window, operand 7, single buffered']
    #allocation15 [shape = 's32[1]{0}', space=sflag, size = 0x4, scoped, tag = 'scoped memory for tpu_custom_call.1']
    #allocation16 [shape = 'u8[8192]{0}', space=vmem, size = 0x2000, scoped, tag = 'input window, operand 8, single buffered']
    #allocation17 [shape = 'u8[16384]{0}', space=vmem, size = 0x4000, scoped, tag = 'output window, operand 0']
    #allocation18 [shape = 'u8[16384]{0}', space=vmem, size = 0x4000, scoped, tag = 'output window, operand 1']
    #allocation19 [shape = 's32[2]{0}', space=sflag, size = 0x8, scoped, tag = 'scoped memory for tpu_custom_call.1']
    #allocation20 [shape = 'u8[8192]{0}', space=vmem, size = 0x2000, scoped, tag = 'output window, operand 2']
    %18 = vsyncpa [#allocation3], 0
    %s19 = scalar_lea.sflag [#allocation3], 1
    %20 = vsyncpa %s19, 0
    %21 = vsyncpa [#allocation6], 0
    %s22 = scalar_lea.sflag [#allocation6], 1
    %23 = vsyncpa %s22, 0
    %24 = vsyncpa [#allocation9], 0
    %25 = vsyncpa [#allocation12], 0
    %26 = vsyncpa [#allocation15], 0
    %27 = vsyncpa [#allocation4], 0
    %s28 = scalar_lea.sflag [#allocation4], 1
    %29 = vsyncpa %s28, 0
    %30 = vsyncpa [#allocation19], 0
    %s31 = scalar_lea.sflag [#allocation19], 1
    %32 = vsyncpa %s31, 0
    loop: start=0, step=1, limit=4
    $region2: #{tpu_custom_call.1} parent=1 // loop_pre_header
      _
    $region3: #{tpu_custom_call.1} parent=1 // loop_header
      %s34 = sphi 0, %s38
      %p35 = scmp.ge.s32.totalorder %s34, 4
      %s44 = sphi 0, %s46
      %s47 = sphi 0, %s44
      %s48 = sphi 0, %s47
      %s64 = sphi 0, %s48
      %s70 = sphi 0, %s72
      %s73 = sphi 0, %s70
      %s74 = sphi 0, %s73
      %s90 = sphi 0, %s74
      %s94 = sphi 0, %s94
      %s96 = sphi 0, %s94
      %s97 = sphi 0, %s96
      %s111 = sphi 0, %s97
      %s115 = sphi 0, %s115
      %s117 = sphi 0, %s115
      %s118 = sphi 0, %s117
      %s132 = sphi 0, %s118
      %s136 = sphi 0, %s136
      %s138 = sphi 0, %s136
      %s139 = sphi 0, %s138
      %s153 = sphi 0, %s139
      %s157 = sphi 0, %s157
      %s159 = sphi 0, %s157
      %s160 = sphi 0, %s159
      %s174 = sphi 0, %s160
      %s178 = sphi 0, %s178
      %s180 = sphi 0, %s178
      %s181 = sphi 0, %s180
      %s195 = sphi 0, %s181
      %s199 = sphi 0, %s199
      %s201 = sphi 0, %s199
      %s202 = sphi 0, %s201
      %s216 = sphi 0, %s202
      %s220 = sphi 0, %s220
      %s222 = sphi 0, %s220
      %s223 = sphi 0, %s222
      %s237 = sphi 0, %s223
      %s241 = sphi 0, %s241
      %s243 = sphi 0, %s241
      %s244 = sphi 0, %s243
      %s258 = sphi 0, %s244
      %s264 = sphi 0, %s266
      %s267 = sphi 0, %s264
      %s268 = sphi 0, %s267
      %s284 = sphi 0, %s268
      %s290 = sphi 0, %s292
      %s293 = sphi 0, %s290
      %s294 = sphi 0, %s293
      %s310 = sphi 0, %s294
      %s316 = sphi 0, %s318
      %s319 = sphi 0, %s316
      %s320 = sphi 0, %s319
      %s336 = sphi 0, %s320
    $region4: #{tpu_custom_call.1} parent=1 // loop_header_branch
      %37 = sbr.rel (%p35) target = $region8
    $region5: #{tpu_custom_call.1} parent=1 // loop_body
      %s39 = ssub.s32 %s34, 1
      %s40 = ssub.s32 %s34, 2
      %s41 = sadd.s32 %s34, 1
      %s42 = ssub.s32 %s34, %s41
      %p43 = scmp.eq.s32.totalorder %s42, 0
      %s45 = sadd.s32 %s44, 1
      %s46 = scalar_select %p43, %s44, %s45
      %p49 = pneg %p43
      %p50 = scmp.eq.s32.totalorder %s34, 1
      %p51 = por %p49, %p50
      %p52 = scmp.ne.s32.totalorder %s44, %s47
      %p53 = scmp.eq.s32.totalorder %s34, 0
      %p54 = por %p52, %p53
      %p55 = scmp.ne.s32.totalorder %s44, %s47
      %p56 = scmp.eq.s32.totalorder %s39, 1
      %p57 = por %p55, %p56
      %p58 = scmp.ne.s32.totalorder %s47, %s48
      %p59 = scmp.eq.s32.totalorder %s39, 0
      %p60 = por %p58, %p59
      %p61 = scmp.ne.s32.totalorder %s47, %s48
      %p62 = scmp.eq.s32.totalorder %s40, 1
      %p63 = por %p61, %p62
      %p65 = scmp.ne.s32.totalorder %s48, %s64
      %p66 = scmp.eq.s32.totalorder %s40, 0
      %p67 = por %p65, %p66
      %s68 = ssub.s32 %s34, %s41
      %p69 = scmp.eq.s32.totalorder %s68, 0
      %s71 = sadd.s32 %s70, 1
      %s72 = scalar_select %p69, %s70, %s71
      %p75 = pneg %p69
      %p76 = scmp.eq.s32.totalorder %s34, 1
      %p77 = por %p75, %p76
      %p78 = scmp.ne.s32.totalorder %s70, %s73
      %p79 = scmp.eq.s32.totalorder %s34, 0
      %p80 = por %p78, %p79
      %p81 = scmp.ne.s32.totalorder %s70, %s73
      %p82 = scmp.eq.s32.totalorder %s39, 1
      %p83 = por %p81, %p82
      %p84 = scmp.ne.s32.totalorder %s73, %s74
      %p85 = scmp.eq.s32.totalorder %s39, 0
      %p86 = por %p84, %p85
      %p87 = scmp.ne.s32.totalorder %s73, %s74
      %p88 = scmp.eq.s32.totalorder %s40, 1
      %p89 = por %p87, %p88
      %p91 = scmp.ne.s32.totalorder %s74, %s90
      %p92 = scmp.eq.s32.totalorder %s40, 0
      %p93 = por %p91, %p92
      %s95 = sadd.s32 %s94, 1
      %p98 = scmp.eq.s32.totalorder %s34, 1
      %p99 = scmp.ne.s32.totalorder %s94, %s96
      %p100 = scmp.eq.s32.totalorder %s34, 0
      %p101 = por %p99, %p100
      %p102 = scmp.ne.s32.totalorder %s94, %s96
      %p103 = scmp.eq.s32.totalorder %s39, 1
      %p104 = por %p102, %p103
      %p105 = scmp.ne.s32.totalorder %s96, %s97
      %p106 = scmp.eq.s32.totalorder %s39, 0
      %p107 = por %p105, %p106
      %p108 = scmp.ne.s32.totalorder %s96, %s97
      %p109 = scmp.eq.s32.totalorder %s40, 1
      %p110 = por %p108, %p109
      %p112 = scmp.ne.s32.totalorder %s97, %s111
      %p113 = scmp.eq.s32.totalorder %s40, 0
      %p114 = por %p112, %p113
      %s116 = sadd.s32 %s115, 1
      %p119 = scmp.eq.s32.totalorder %s34, 1
      %p120 = scmp.ne.s32.totalorder %s115, %s117
      %p121 = scmp.eq.s32.totalorder %s34, 0
      %p122 = por %p120, %p121
      %p123 = scmp.ne.s32.totalorder %s115, %s117
      %p124 = scmp.eq.s32.totalorder %s39, 1
      %p125 = por %p123, %p124
      %p126 = scmp.ne.s32.totalorder %s117, %s118
      %p127 = scmp.eq.s32.totalorder %s39, 0
      %p128 = por %p126, %p127
      %p129 = scmp.ne.s32.totalorder %s117, %s118
      %p130 = scmp.eq.s32.totalorder %s40, 1
      %p131 = por %p129, %p130
      %p133 = scmp.ne.s32.totalorder %s118, %s132
      %p134 = scmp.eq.s32.totalorder %s40, 0
      %p135 = por %p133, %p134
      %s137 = sadd.s32 %s136, 1
      %p140 = scmp.eq.s32.totalorder %s34, 1
      %p141 = scmp.ne.s32.totalorder %s136, %s138
      %p142 = scmp.eq.s32.totalorder %s34, 0
      %p143 = por %p141, %p142
      %p144 = scmp.ne.s32.totalorder %s136, %s138
      %p145 = scmp.eq.s32.totalorder %s39, 1
      %p146 = por %p144, %p145
      %p147 = scmp.ne.s32.totalorder %s138, %s139
      %p148 = scmp.eq.s32.totalorder %s39, 0
      %p149 = por %p147, %p148
      %p150 = scmp.ne.s32.totalorder %s138, %s139
      %p151 = scmp.eq.s32.totalorder %s40, 1
      %p152 = por %p150, %p151
      %p154 = scmp.ne.s32.totalorder %s139, %s153
      %p155 = scmp.eq.s32.totalorder %s40, 0
      %p156 = por %p154, %p155
      %s158 = sadd.s32 %s157, 1
      %p161 = scmp.eq.s32.totalorder %s34, 1
      %p162 = scmp.ne.s32.totalorder %s157, %s159
      %p163 = scmp.eq.s32.totalorder %s34, 0
      %p164 = por %p162, %p163
      %p165 = scmp.ne.s32.totalorder %s157, %s159
      %p166 = scmp.eq.s32.totalorder %s39, 1
      %p167 = por %p165, %p166
      %p168 = scmp.ne.s32.totalorder %s159, %s160
      %p169 = scmp.eq.s32.totalorder %s39, 0
      %p170 = por %p168, %p169
      %p171 = scmp.ne.s32.totalorder %s159, %s160
      %p172 = scmp.eq.s32.totalorder %s40, 1
      %p173 = por %p171, %p172
      %p175 = scmp.ne.s32.totalorder %s160, %s174
      %p176 = scmp.eq.s32.totalorder %s40, 0
      %p177 = por %p175, %p176
      %s179 = sadd.s32 %s178, 1
      %p182 = scmp.eq.s32.totalorder %s34, 1
      %p183 = scmp.ne.s32.totalorder %s178, %s180
      %p184 = scmp.eq.s32.totalorder %s34, 0
      %p185 = por %p183, %p184
      %p186 = scmp.ne.s32.totalorder %s178, %s180
      %p187 = scmp.eq.s32.totalorder %s39, 1
      %p188 = por %p186, %p187
      %p189 = scmp.ne.s32.totalorder %s180, %s181
      %p190 = scmp.eq.s32.totalorder %s39, 0
      %p191 = por %p189, %p190
      %p192 = scmp.ne.s32.totalorder %s180, %s181
      %p193 = scmp.eq.s32.totalorder %s40, 1
      %p194 = por %p192, %p193
      %p196 = scmp.ne.s32.totalorder %s181, %s195
      %p197 = scmp.eq.s32.totalorder %s40, 0
      %p198 = por %p196, %p197
      %s200 = sadd.s32 %s199, 1
      %p203 = scmp.eq.s32.totalorder %s34, 1
      %p204 = scmp.ne.s32.totalorder %s199, %s201
      %p205 = scmp.eq.s32.totalorder %s34, 0
      %p206 = por %p204, %p205
      %p207 = scmp.ne.s32.totalorder %s199, %s201
      %p208 = scmp.eq.s32.totalorder %s39, 1
      %p209 = por %p207, %p208
      %p210 = scmp.ne.s32.totalorder %s201, %s202
      %p211 = scmp.eq.s32.totalorder %s39, 0
      %p212 = por %p210, %p211
      %p213 = scmp.ne.s32.totalorder %s201, %s202
      %p214 = scmp.eq.s32.totalorder %s40, 1
      %p215 = por %p213, %p214
      %p217 = scmp.ne.s32.totalorder %s202, %s216
      %p218 = scmp.eq.s32.totalorder %s40, 0
      %p219 = por %p217, %p218
      %s221 = sadd.s32 %s220, 1
      %p224 = scmp.eq.s32.totalorder %s34, 1
      %p225 = scmp.ne.s32.totalorder %s220, %s222
      %p226 = scmp.eq.s32.totalorder %s34, 0
      %p227 = por %p225, %p226
      %p228 = scmp.ne.s32.totalorder %s220, %s222
      %p229 = scmp.eq.s32.totalorder %s39, 1
      %p230 = por %p228, %p229
      %p231 = scmp.ne.s32.totalorder %s222, %s223
      %p232 = scmp.eq.s32.totalorder %s39, 0
      %p233 = por %p231, %p232
      %p234 = scmp.ne.s32.totalorder %s222, %s223
      %p235 = scmp.eq.s32.totalorder %s40, 1
      %p236 = por %p234, %p235
      %p238 = scmp.ne.s32.totalorder %s223, %s237
      %p239 = scmp.eq.s32.totalorder %s40, 0
      %p240 = por %p238, %p239
      %s242 = sadd.s32 %s241, 1
      %p245 = scmp.eq.s32.totalorder %s34, 1
      %p246 = scmp.ne.s32.totalorder %s241, %s243
      %p247 = scmp.eq.s32.totalorder %s34, 0
      %p248 = por %p246, %p247
      %p249 = scmp.ne.s32.totalorder %s241, %s243
      %p250 = scmp.eq.s32.totalorder %s39, 1
      %p251 = por %p249, %p250
      %p252 = scmp.ne.s32.totalorder %s243, %s244
      %p253 = scmp.eq.s32.totalorder %s39, 0
      %p254 = por %p252, %p253
      %p255 = scmp.ne.s32.totalorder %s243, %s244
      %p256 = scmp.eq.s32.totalorder %s40, 1
      %p257 = por %p255, %p256
      %p259 = scmp.ne.s32.totalorder %s244, %s258
      %p260 = scmp.eq.s32.totalorder %s40, 0
      %p261 = por %p259, %p260
      %s262 = ssub.s32 %s34, %s41
      %p263 = scmp.eq.s32.totalorder %s262, 0
      %s265 = sadd.s32 %s264, 1
      %s266 = scalar_select %p263, %s264, %s265
      %p269 = pneg %p263
      %p270 = scmp.eq.s32.totalorder %s34, 1
      %p271 = por %p269, %p270
      %p272 = scmp.ne.s32.totalorder %s264, %s267
      %p273 = scmp.eq.s32.totalorder %s34, 0
      %p274 = por %p272, %p273
      %p275 = scmp.ne.s32.totalorder %s264, %s267
      %p276 = scmp.eq.s32.totalorder %s39, 1
      %p277 = por %p275, %p276
      %p278 = scmp.ne.s32.totalorder %s267, %s268
      %p279 = scmp.eq.s32.totalorder %s39, 0
      %p280 = por %p278, %p279
      %p281 = scmp.ne.s32.totalorder %s267, %s268
      %p282 = scmp.eq.s32.totalorder %s40, 1
      %p283 = por %p281, %p282
      %p285 = scmp.ne.s32.totalorder %s268, %s284
      %p286 = scmp.eq.s32.totalorder %s40, 0
      %p287 = por %p285, %p286
      %s288 = ssub.s32 %s34, %s41
      %p289 = scmp.eq.s32.totalorder %s288, 0
      %s291 = sadd.s32 %s290, 1
      %s292 = scalar_select %p289, %s290, %s291
      %p295 = pneg %p289
      %p296 = scmp.eq.s32.totalorder %s34, 1
      %p297 = por %p295, %p296
      %p298 = scmp.ne.s32.totalorder %s290, %s293
      %p299 = scmp.eq.s32.totalorder %s34, 0
      %p300 = por %p298, %p299
      %p301 = scmp.ne.s32.totalorder %s290, %s293
      %p302 = scmp.eq.s32.totalorder %s39, 1
      %p303 = por %p301, %p302
      %p304 = scmp.ne.s32.totalorder %s293, %s294
      %p305 = scmp.eq.s32.totalorder %s39, 0
      %p306 = por %p304, %p305
      %p307 = scmp.ne.s32.totalorder %s293, %s294
      %p308 = scmp.eq.s32.totalorder %s40, 1
      %p309 = por %p307, %p308
      %p311 = scmp.ne.s32.totalorder %s294, %s310
      %p312 = scmp.eq.s32.totalorder %s40, 0
      %p313 = por %p311, %p312
      %s314 = ssub.s32 %s34, %s41
      %p315 = scmp.eq.s32.totalorder %s314, 0
      %s317 = sadd.s32 %s316, 1
      %s318 = scalar_select %p315, %s316, %s317
      %p321 = pneg %p315
      %p322 = scmp.eq.s32.totalorder %s34, 1
      %p323 = por %p321, %p322
      %p324 = scmp.ne.s32.totalorder %s316, %s319
      %p325 = scmp.eq.s32.totalorder %s34, 0
      %p326 = por %p324, %p325
      %p327 = scmp.ne.s32.totalorder %s316, %s319
      %p328 = scmp.eq.s32.totalorder %s39, 1
      %p329 = por %p327, %p328
      %p330 = scmp.ne.s32.totalorder %s319, %s320
      %p331 = scmp.eq.s32.totalorder %s39, 0
      %p332 = por %p330, %p331
      %p333 = scmp.ne.s32.totalorder %s319, %s320
      %p334 = scmp.eq.s32.totalorder %s40, 1
      %p335 = por %p333, %p334
      %p337 = scmp.ne.s32.totalorder %s320, %s336
      %p338 = scmp.eq.s32.totalorder %s40, 0
      %p339 = por %p337, %p338
      %p340 = scmp.le.s32.totalorder 1, %s34
      %p341 = scmp.lt.s32.totalorder %s34, 3
      %p342 = pnand %p340, %p341
      %p343 = pneg %p342
      // Predicated region
      $region9: #{tpu_custom_call.1} parent=5 // pred_check
        _
      $region10: #{tpu_custom_call.1} parent=5 // pred_check_branch
        %345 = sbr.rel (%p342) target = $region12
      $region11: #{tpu_custom_call.1} parent=5 // pred_region
        %s346 = ssub.s32 %s34, 1
        // Predicated region
        $region13: #{tpu_custom_call.1} parent=11 // pred_check
          %p347 = pneg %p107
        $region14: #{tpu_custom_call.1} parent=11 // pred_check_branch
          %349 = sbr.rel (%p347) target = $region16
        $region15: #{tpu_custom_call.1} parent=11 // pred_region
          %s351 = ssub.s32 256, 256
          %352 = vsyncadd [#allocation6], %s351
          %s353 = sshll.u32 [#allocation7], 4
          %s354 = int_to_ptr.vmem [resolvable:$true] %s353
          %359 = dma.hbm_to_vmem [thread:$0]  %s2, 256, %s354, [#allocation6], 128, 128, 8
        $region16: #{tpu_custom_call.1} parent=11 // pred_fallthru
          _
        // Predicated region
        $region17: #{tpu_custom_call.1} parent=11 // pred_check
          %p360 = pneg %p128
        $region18: #{tpu_custom_call.1} parent=11 // pred_check_branch
          %362 = sbr.rel (%p360) target = $region20
        $region19: #{tpu_custom_call.1} parent=11 // pred_region
          %s364 = ssub.s32 256, 256
          %365 = vsyncadd [#allocation9], %s364
          %s366 = sshll.u32 [#allocation8], 4
          %s367 = int_to_ptr.vmem [resolvable:$true] %s366
          %372 = dma.hbm_to_vmem [thread:$0]  %s3, 256, %s367, [#allocation9], 128, 128, 8
        $region20: #{tpu_custom_call.1} parent=11 // pred_fallthru
          _
        // Predicated region
        $region21: #{tpu_custom_call.1} parent=11 // pred_check
          %p373 = pneg %p149
        $region22: #{tpu_custom_call.1} parent=11 // pred_check_branch
          %375 = sbr.rel (%p373) target = $region24
        $region23: #{tpu_custom_call.1} parent=11 // pred_region
          %s377 = ssub.s32 256, 256
          %378 = vsyncadd [#allocation9], %s377
          %s379 = sshll.u32 [#allocation10], 4
          %s380 = int_to_ptr.vmem [resolvable:$true] %s379
          %385 = dma.hbm_to_vmem [thread:$0]  %s4, 256, %s380, [#allocation9], 128, 128, 8
        $region24: #{tpu_custom_call.1} parent=11 // pred_fallthru
          _
        // Predicated region
        $region25: #{tpu_custom_call.1} parent=11 // pred_check
          %p386 = pneg %p170
        $region26: #{tpu_custom_call.1} parent=11 // pred_check_branch
          %388 = sbr.rel (%p386) target = $region28
        $region27: #{tpu_custom_call.1} parent=11 // pred_region
          %s390 = ssub.s32 256, 256
          %391 = vsyncadd [#allocation12], %s390
          %s392 = sshll.u32 [#allocation11], 4
          %s393 = int_to_ptr.vmem [resolvable:$true] %s392
          %398 = dma.hbm_to_vmem [thread:$0]  %s5, 256, %s393, [#allocation12], 128, 128, 8
        $region28: #{tpu_custom_call.1} parent=11 // pred_fallthru
          _
        // Predicated region
        $region29: #{tpu_custom_call.1} parent=11 // pred_check
          %p399 = pneg %p191
        $region30: #{tpu_custom_call.1} parent=11 // pred_check_branch
          %401 = sbr.rel (%p399) target = $region32
        $region31: #{tpu_custom_call.1} parent=11 // pred_region
          %s403 = ssub.s32 256, 256
          %404 = vsyncadd [#allocation12], %s403
          %s405 = sshll.u32 [#allocation13], 4
          %s406 = int_to_ptr.vmem [resolvable:$true] %s405
          %411 = dma.hbm_to_vmem [thread:$0]  %s6, 256, %s406, [#allocation12], 128, 128, 8
        $region32: #{tpu_custom_call.1} parent=11 // pred_fallthru
          _
        // Predicated region
        $region33: #{tpu_custom_call.1} parent=11 // pred_check
          %p412 = pneg %p212
        $region34: #{tpu_custom_call.1} parent=11 // pred_check_branch
          %414 = sbr.rel (%p412) target = $region36
        $region35: #{tpu_custom_call.1} parent=11 // pred_region
          %s416 = ssub.s32 256, 256
          %417 = vsyncadd [#allocation15], %s416
          %s418 = sshll.u32 [#allocation14], 4
          %s419 = int_to_ptr.vmem [resolvable:$true] %s418
          %424 = dma.hbm_to_vmem [thread:$0]  %s7, 256, %s419, [#allocation15], 128, 128, 8
        $region36: #{tpu_custom_call.1} parent=11 // pred_fallthru
          _
        // Predicated region
        $region37: #{tpu_custom_call.1} parent=11 // pred_check
          %p425 = pneg %p233
        $region38: #{tpu_custom_call.1} parent=11 // pred_check_branch
          %427 = sbr.rel (%p425) target = $region40
        $region39: #{tpu_custom_call.1} parent=11 // pred_region
          %s429 = ssub.s32 256, 256
          %430 = vsyncadd [#allocation15], %s429
          %s431 = sshll.u32 [#allocation16], 4
          %s432 = int_to_ptr.vmem [resolvable:$true] %s431
          %437 = dma.hbm_to_vmem [thread:$0]  %s8, 256, %s432, [#allocation15], 128, 128, 8
        $region40: #{tpu_custom_call.1} parent=11 // pred_fallthru
          _
        // Predicated region
        $region41: #{tpu_custom_call.1} parent=11 // pred_check
          %p438 = pneg %p254
        $region42: #{tpu_custom_call.1} parent=11 // pred_check_branch
          %440 = sbr.rel (%p438) target = $region44
        $region43: #{tpu_custom_call.1} parent=11 // pred_region
          _
        $region44: #{tpu_custom_call.1} parent=11 // pred_fallthru
          _
      $region12: #{tpu_custom_call.1} parent=5 // pred_fallthru
        _
      %p441 = scmp.lt.s32.totalorder %s34, 2
      // Predicated region
      $region45: #{tpu_custom_call.1} parent=5 // pred_check
        %p442 = pneg %p441
      $region46: #{tpu_custom_call.1} parent=5 // pred_check_branch
        %444 = sbr.rel (%p442) target = $region48
      $region47: #{tpu_custom_call.1} parent=5 // pred_region
        // Predicated region
        $region49: #{tpu_custom_call.1} parent=47 // pred_check
          %p445 = pneg %p54
        $region50: #{tpu_custom_call.1} parent=47 // pred_check_branch
          %447 = sbr.rel (%p445) target = $region52
        $region51: #{tpu_custom_call.1} parent=47 // pred_region
          %s448 = sand.u32 %s44, 1
          %s449 = scalar_lea.sflag [#allocation3], %s448
          %s450 = sand.u32 %s44, 1
          %s451 = smul.addr %s450, 16
          %s452 = scalar_lea.vmem [#allocation2], %s451
          %s454 = ssub.s32 256, 256
          %455 = vsyncadd %s449, %s454
          %s456 = smul.addr %s34, 2
          %s457 = smul.addr %s456, 128
          %s458 = scalar_lea.hbm %s0, %s457
          %s459 = sshll.u32 %s452, 4
          %s460 = int_to_ptr.vmem [resolvable:$true] %s459
          %465 = dma.hbm_to_vmem [thread:$0]  %s458, 256, %s460, %s449, 128, 128, 8
        $region52: #{tpu_custom_call.1} parent=47 // pred_fallthru
          _
        // Predicated region
        $region53: #{tpu_custom_call.1} parent=47 // pred_check
          %p466 = pneg %p80
        $region54: #{tpu_custom_call.1} parent=47 // pred_check_branch
          %468 = sbr.rel (%p466) target = $region56
        $region55: #{tpu_custom_call.1} parent=47 // pred_region
          %s469 = sand.u32 %s34, 1
          %s470 = scalar_lea.sflag [#allocation6], %s469
          %s471 = sand.u32 %s70, 1
          %s472 = smul.addr %s471, 16
          %s473 = scalar_lea.vmem [#allocation5], %s472
          %s475 = ssub.s32 256, 256
          %476 = vsyncadd %s470, %s475
          %s477 = smul.addr %s34, 2
          %s478 = smul.addr %s477, 128
          %s479 = scalar_lea.hbm %s1, %s478
          %s480 = sshll.u32 %s473, 4
          %s481 = int_to_ptr.vmem [resolvable:$true] %s480
          %486 = dma.hbm_to_vmem [thread:$0]  %s479, 256, %s481, %s470, 128, 128, 8
        $region56: #{tpu_custom_call.1} parent=47 // pred_fallthru
          _
      $region48: #{tpu_custom_call.1} parent=5 // pred_fallthru
        _
      %p487 = scmp.le.s32.totalorder 1, %s34
      %p488 = scmp.lt.s32.totalorder %s34, 3
      %p489 = pnand %p487, %p488
      %p490 = pneg %p489
      // Predicated region
      $region57: #{tpu_custom_call.1} parent=5 // pred_check
        _
      $region58: #{tpu_custom_call.1} parent=5 // pred_check_branch
        %492 = sbr.rel (%p489) target = $region60
      $region59: #{tpu_custom_call.1} parent=5 // pred_region
        %s493 = ssub.s32 %s34, 1
        %s494 = sand.u32 %s47, 1
        %s495 = scalar_lea.sflag [#allocation3], %s494
        %s496 = sand.u32 %s47, 1
        %s497 = smul.addr %s496, 16
        %s498 = scalar_lea.vmem [#allocation2], %s497
        // Predicated region
        $region61: #{tpu_custom_call.1} parent=59 // pred_check
          %p499 = pneg %p60
        $region62: #{tpu_custom_call.1} parent=59 // pred_check_branch
          %501 = sbr.rel (%p499) target = $region64
        $region63: #{tpu_custom_call.1} parent=59 // pred_region
          %502 = dma.done %s495, 256
        $region64: #{tpu_custom_call.1} parent=59 // pred_fallthru
          _
        %s503 = sand.u32 %s39, 1
        %s504 = scalar_lea.sflag [#allocation6], %s503
        %s505 = sand.u32 %s73, 1
        %s506 = smul.addr %s505, 16
        %s507 = scalar_lea.vmem [#allocation5], %s506
        // Predicated region
        $region65: #{tpu_custom_call.1} parent=59 // pred_check
          %p508 = pneg %p86
        $region66: #{tpu_custom_call.1} parent=59 // pred_check_branch
          %510 = sbr.rel (%p508) target = $region68
        $region67: #{tpu_custom_call.1} parent=59 // pred_region
          %511 = dma.done %s504, 256
        $region68: #{tpu_custom_call.1} parent=59 // pred_fallthru
          _
        // Predicated region
        $region69: #{tpu_custom_call.1} parent=59 // pred_check
          %p512 = pneg %p107
        $region70: #{tpu_custom_call.1} parent=59 // pred_check_branch
          %514 = sbr.rel (%p512) target = $region72
        $region71: #{tpu_custom_call.1} parent=59 // pred_region
          %515 = dma.done [#allocation6], 256
        $region72: #{tpu_custom_call.1} parent=59 // pred_fallthru
          _
        // Predicated region
        $region73: #{tpu_custom_call.1} parent=59 // pred_check
          %p516 = pneg %p128
        $region74: #{tpu_custom_call.1} parent=59 // pred_check_branch
          %518 = sbr.rel (%p516) target = $region76
        $region75: #{tpu_custom_call.1} parent=59 // pred_region
          %519 = dma.done [#allocation9], 256
        $region76: #{tpu_custom_call.1} parent=59 // pred_fallthru
          _
        // Predicated region
        $region77: #{tpu_custom_call.1} parent=59 // pred_check
          %p520 = pneg %p149
        $region78: #{tpu_custom_call.1} parent=59 // pred_check_branch
          %522 = sbr.rel (%p520) target = $region80
        $region79: #{tpu_custom_call.1} parent=59 // pred_region
          %523 = dma.done [#allocation9], 256
        $region80: #{tpu_custom_call.1} parent=59 // pred_fallthru
          _
        // Predicated region
        $region81: #{tpu_custom_call.1} parent=59 // pred_check
          %p524 = pneg %p170
        $region82: #{tpu_custom_call.1} parent=59 // pred_check_branch
          %526 = sbr.rel (%p524) target = $region84
        $region83: #{tpu_custom_call.1} parent=59 // pred_region
          %527 = dma.done [#allocation12], 256
        $region84: #{tpu_custom_call.1} parent=59 // pred_fallthru
          _
        // Predicated region
        $region85: #{tpu_custom_call.1} parent=59 // pred_check
          %p528 = pneg %p191
        $region86: #{tpu_custom_call.1} parent=59 // pred_check_branch
          %530 = sbr.rel (%p528) target = $region88
        $region87: #{tpu_custom_call.1} parent=59 // pred_region
          %531 = dma.done [#allocation12], 256
        $region88: #{tpu_custom_call.1} parent=59 // pred_fallthru
          _
        // Predicated region
        $region89: #{tpu_custom_call.1} parent=59 // pred_check
          %p532 = pneg %p212
        $region90: #{tpu_custom_call.1} parent=59 // pred_check_branch
          %534 = sbr.rel (%p532) target = $region92
        $region91: #{tpu_custom_call.1} parent=59 // pred_region
          %535 = dma.done [#allocation15], 256
        $region92: #{tpu_custom_call.1} parent=59 // pred_fallthru
          _
        // Predicated region
        $region93: #{tpu_custom_call.1} parent=59 // pred_check
          %p536 = pneg %p233
        $region94: #{tpu_custom_call.1} parent=59 // pred_check_branch
          %538 = sbr.rel (%p536) target = $region96
        $region95: #{tpu_custom_call.1} parent=59 // pred_region
          %539 = dma.done [#allocation15], 256
        $region96: #{tpu_custom_call.1} parent=59 // pred_fallthru
          _
        %s540 = sand.u32 %s47, 1
        %s541 = scalar_lea.sflag [#allocation3], %s540
        %s542 = sand.u32 %s47, 1
        %s543 = smul.addr %s542, 16
        %s544 = scalar_lea.vmem [#allocation2], %s543
        %p545 = pneg %p60
        %p546 = pneg %p57
        %s547 = sand.u32 %s39, 1
        %s548 = scalar_lea.sflag [#allocation6], %s547
        %s549 = sand.u32 %s73, 1
        %s550 = smul.addr %s549, 16
        %s551 = scalar_lea.vmem [#allocation5], %s550
        %p552 = pneg %p86
        %p553 = pneg %p83
        %p554 = pneg %p107
        %p555 = pneg %p104
        %p556 = pneg %p128
        %p557 = pneg %p125
        %p558 = pneg %p149
        %p559 = pneg %p146
        %p560 = pneg %p170
        %p561 = pneg %p167
        %p562 = pneg %p191
        %p563 = pneg %p188
        %p564 = pneg %p212
        %p565 = pneg %p209
        %p566 = pneg %p233
        %p567 = pneg %p230
        %p568 = pneg %p254
        %p569 = pneg %p251
        %p570 = pneg %p280
        %p571 = pneg %p277
        %s572 = sand.u32 %s267, 1
        %s573 = scalar_lea.sflag [#allocation4], %s572
        %s574 = sand.u32 %s267, 1
        %s575 = smul.addr %s574, 16
        %s576 = scalar_lea.vmem [#allocation17], %s575
        %p577 = pneg %p306
        %p578 = pneg %p303
        %s579 = sand.u32 %s39, 1
        %s580 = scalar_lea.sflag [#allocation19], %s579
        %s581 = sand.u32 %s293, 1
        %s582 = smul.addr %s581, 16
        %s583 = scalar_lea.vmem [#allocation18], %s582
        %p584 = pneg %p332
        %p585 = pneg %p329
        %s586 = sand.u32 %s39, 1
        %s587 = scalar_lea.sflag [#allocation19], %s586
        %s588 = sand.u32 %s319, 1
        %s589 = smul.addr %s588, 8
        %s590 = scalar_lea.vmem [#allocation20], %s589
        %v591 = vld [vmem:[#allocation7] sm:$0xff]
        %v592 = vld [vmem:[#allocation7 + $0x8] sm:$0xff]
        %v593 = vld [vmem:[#allocation8] sm:$0xff]
        %v594 = vld [vmem:[#allocation8 + $0x8] sm:$0xff]
        %v595 = vld [vmem:[#allocation10] sm:$0xff]
        %v596 = vld [vmem:[#allocation10 + $0x8] sm:$0xff]
        %v597 = vld [vmem:[#allocation13] sm:$0xff]
        %v598 = vld [vmem:[#allocation13 + $0x8] sm:$0xff]
        %v599 = vld [vmem:[#allocation14] sm:$0xff]
        %v600 = vld [vmem:[#allocation14 + $0x8] sm:$0xff]
        %v601 = vld [vmem:[#allocation16] sm:$0xff]
        %v602 = vld [vmem:[#allocation16 + $0x8] sm:$0xff]
        %v603 = vld [vmem:[%s498] sm:$0xff]
        %v604 = vld [vmem:[%s498 + $0x8] sm:$0xff]
        %v605 = vld [vmem:[%s507] sm:$0xff]
        %v606 = vld [vmem:[%s507 + $0x8] sm:$0xff]
        %v607 = vadd.f32 %v603, %v605
        %v608 = vadd.f32 %v604, %v606
        %vm609 = vcmask 130048
        %v611 = vsel %vm609, %v591, 0
        %v614 = vsel %vm609, %v592, 0
        %616 = vmatprep.subr.mxu0 0.0
        %617 = vmatpush1.msra.mxu0 0.0
        %618 = vmatprep.subr.mxu0 0.0
        %619 = vmatpush1.msra.mxu0 0.0
        %620 = vmatprep.subr.mxu0 0.0
        %621 = vmatpush1.msra.mxu0 0.0
        %622 = vmatprep.subr.mxu0 0.0
        %623 = vmatpush1.msra.mxu0 0.0
        %624 = vmatprep.subr.mxu0 0.0
        %625 = vmatpush1.msra.mxu0 0.0
        %626 = vmatprep.subr.mxu0 0.0
        %627 = vmatpush1.msra.mxu0 0.0
        %628 = vmatprep.subr.mxu0 0.0
        %629 = vmatpush1.msra.mxu0 0.0
        %630 = vmatprep.subr.mxu0 0.0
        %631 = vmatpush1.msra.mxu0 0.0
        %632 = vmatprep.subr.mxu0 0.0
        %633 = vmatpush1.msra.mxu0 0.0
        %634 = vmatprep.subr.mxu0 0.0
        %635 = vmatpush1.msra.mxu0 0.0
        %636 = vmatprep.subr.mxu0 0.0
        %637 = vmatpush1.msra.mxu0 0.0
        %638 = vmatprep.subr.mxu0 0.0
        %639 = vmatpush1.msra.mxu0 0.0
        %640 = vmatprep.subr.mxu0 0.0
        %641 = vmatpush1.msra.mxu0 0.0
        %642 = vmatprep.subr.mxu0 0.0
        %643 = vmatpush1.msra.mxu0 0.0
        %644 = vmatprep.subr.mxu0 0.0
        %645 = vmatpush1.msra.mxu0 %v604
        %646 = vmatprep.subr.mxu0 0.0
        %647 = vmatpush1.msra.mxu0 %v603
        %648 = vmatprep.subr.mxu0 0.0
        %649 = vmatpush2.msra.mxu0 0.0
        %650 = vmatprep.subr.mxu0 0.0
        %651 = vmatpush2.msra.mxu0 0.0
        %652 = vmatprep.subr.mxu0 0.0
        %653 = vmatpush2.msra.mxu0 0.0
        %654 = vmatprep.subr.mxu0 0.0
        %655 = vmatpush2.msra.mxu0 0.0
        %656 = vmatprep.subr.mxu0 0.0
        %657 = vmatpush2.msra.mxu0 0.0
        %658 = vmatprep.subr.mxu0 0.0
        %659 = vmatpush2.msra.mxu0 0.0
        %660 = vmatprep.subr.mxu0 0.0
        %661 = vmatpush2.msra.mxu0 0.0
        %662 = vmatprep.subr.mxu0 0.0
        %663 = vmatpush2.msra.mxu0 0.0
        %664 = vmatprep.subr.mxu0 0.0
        %665 = vmatpush2.msra.mxu0 0.0
        %666 = vmatprep.subr.mxu0 0.0
        %667 = vmatpush2.msra.mxu0 0.0
        %668 = vmatprep.subr.mxu0 0.0
        %669 = vmatpush2.msra.mxu0 0.0
        %670 = vmatprep.subr.mxu0 0.0
        %671 = vmatpush2.msra.mxu0 0.0
        %672 = vmatprep.subr.mxu0 0.0
        %673 = vmatpush2.msra.mxu0 0.0
        %674 = vmatprep.subr.mxu0 0.0
        %675 = vmatpush2.msra.mxu0 0.0
        %676 = vmatprep.subr.mxu0 0.0
        %677 = vmatpush2.msra.mxu0 0.0
        %678 = vmatprep.subr.mxu0 0.0
        %679 = vmatpush2.msra.mxu0 0.0
        %680 = vmatprep.mubr.f32.mxu0 0.0
        %681 = vmatmul.mubr.f32.gmra.mxu0 %v611
        %v682 = vpop.f32.mrf.mxu0
        %v683 = vadd.f32 0.0, %v682
        %v684 = vpop.f32.mrf.mxu0
        %685 = vmatprep.mubr.f32.mxu0 0.0
        %686 = vmatmul.mubr.f32.gmra.mxu0 %v614
        %v687 = vpop.f32.mrf.mxu0
        %v688 = vadd.f32 0.0, %v687
        %v689 = vpop.f32.mrf.mxu0
        %690 = vdwg.mxu0
        %v692 = vsel %vm609, %v593, 0
        %v695 = vsel %vm609, %v594, 0
        %697 = vmatprep.subr.mxu0 0.0
        %698 = vmatpush1.msra.mxu0 0.0
        %699 = vmatprep.subr.mxu0 0.0
        %700 = vmatpush1.msra.mxu0 0.0
        %701 = vmatprep.subr.mxu0 0.0
        %702 = vmatpush1.msra.mxu0 0.0
        %703 = vmatprep.subr.mxu0 0.0
        %704 = vmatpush1.msra.mxu0 0.0
        %705 = vmatprep.subr.mxu0 0.0
        %706 = vmatpush1.msra.mxu0 0.0
        %707 = vmatprep.subr.mxu0 0.0
        %708 = vmatpush1.msra.mxu0 0.0
        %709 = vmatprep.subr.mxu0 0.0
        %710 = vmatpush1.msra.mxu0 0.0
        %711 = vmatprep.subr.mxu0 0.0
        %712 = vmatpush1.msra.mxu0 0.0
        %713 = vmatprep.subr.mxu0 0.0
        %714 = vmatpush1.msra.mxu0 0.0
        %715 = vmatprep.subr.mxu0 0.0
        %716 = vmatpush1.msra.mxu0 0.0
        %717 = vmatprep.subr.mxu0 0.0
        %718 = vmatpush1.msra.mxu0 0.0
        %719 = vmatprep.subr.mxu0 0.0
        %720 = vmatpush1.msra.mxu0 0.0
        %721 = vmatprep.subr.mxu0 0.0
        %722 = vmatpush1.msra.mxu0 0.0
        %723 = vmatprep.subr.mxu0 0.0
        %724 = vmatpush1.msra.mxu0 0.0
        %725 = vmatprep.subr.mxu0 0.0
        %726 = vmatpush1.msra.mxu0 %v606
        %727 = vmatprep.subr.mxu0 0.0
        %728 = vmatpush1.msra.mxu0 %v605
        %729 = vmatprep.subr.mxu0 0.0
        %730 = vmatpush2.msra.mxu0 0.0
        %731 = vmatprep.subr.mxu0 0.0
        %732 = vmatpush2.msra.mxu0 0.0
        %733 = vmatprep.subr.mxu0 0.0
        %734 = vmatpush2.msra.mxu0 0.0
        %735 = vmatprep.subr.mxu0 0.0
        %736 = vmatpush2.msra.mxu0 0.0
        %737 = vmatprep.subr.mxu0 0.0
        %738 = vmatpush2.msra.mxu0 0.0
        %739 = vmatprep.subr.mxu0 0.0
        %740 = vmatpush2.msra.mxu0 0.0
        %741 = vmatprep.subr.mxu0 0.0
        %742 = vmatpush2.msra.mxu0 0.0
        %743 = vmatprep.subr.mxu0 0.0
        %744 = vmatpush2.msra.mxu0 0.0
        %745 = vmatprep.subr.mxu0 0.0
        %746 = vmatpush2.msra.mxu0 0.0
        %747 = vmatprep.subr.mxu0 0.0
        %748 = vmatpush2.msra.mxu0 0.0
        %749 = vmatprep.subr.mxu0 0.0
        %750 = vmatpush2.msra.mxu0 0.0
        %751 = vmatprep.subr.mxu0 0.0
        %752 = vmatpush2.msra.mxu0 0.0
        %753 = vmatprep.subr.mxu0 0.0
        %754 = vmatpush2.msra.mxu0 0.0
        %755 = vmatprep.subr.mxu0 0.0
        %756 = vmatpush2.msra.mxu0 0.0
        %757 = vmatprep.subr.mxu0 0.0
        %758 = vmatpush2.msra.mxu0 0.0
        %759 = vmatprep.subr.mxu0 0.0
        %760 = vmatpush2.msra.mxu0 0.0
        %761 = vmatprep.mubr.f32.mxu0 0.0
        %762 = vmatmul.mubr.f32.gmra.mxu0 %v692
        %v763 = vpop.f32.mrf.mxu0
        %v764 = vadd.f32 0.0, %v763
        %v765 = vpop.f32.mrf.mxu0
        %766 = vmatprep.mubr.f32.mxu0 0.0
        %767 = vmatmul.mubr.f32.gmra.mxu0 %v695
        %v768 = vpop.f32.mrf.mxu0
        %v769 = vadd.f32 0.0, %v768
        %v770 = vpop.f32.mrf.mxu0
        %771 = vdwg.mxu0
        %v773 = vsel %vm609, %v595, 0
        %v776 = vsel %vm609, %v596, 0
        %778 = vmatprep.subr.mxu0 0.0
        %779 = vmatpush1.msra.mxu0 0.0
        %780 = vmatprep.subr.mxu0 0.0
        %781 = vmatpush1.msra.mxu0 0.0
        %782 = vmatprep.subr.mxu0 0.0
        %783 = vmatpush1.msra.mxu0 0.0
        %784 = vmatprep.subr.mxu0 0.0
        %785 = vmatpush1.msra.mxu0 0.0
        %786 = vmatprep.subr.mxu0 0.0
        %787 = vmatpush1.msra.mxu0 0.0
        %788 = vmatprep.subr.mxu0 0.0
        %789 = vmatpush1.msra.mxu0 0.0
        %790 = vmatprep.subr.mxu0 0.0
        %791 = vmatpush1.msra.mxu0 0.0
        %792 = vmatprep.subr.mxu0 0.0
        %793 = vmatpush1.msra.mxu0 0.0
        %794 = vmatprep.subr.mxu0 0.0
        %795 = vmatpush1.msra.mxu0 0.0
        %796 = vmatprep.subr.mxu0 0.0
        %797 = vmatpush1.msra.mxu0 0.0
        %798 = vmatprep.subr.mxu0 0.0
        %799 = vmatpush1.msra.mxu0 0.0
        %800 = vmatprep.subr.mxu0 0.0
        %801 = vmatpush1.msra.mxu0 0.0
        %802 = vmatprep.subr.mxu0 0.0
        %803 = vmatpush1.msra.mxu0 0.0
        %804 = vmatprep.subr.mxu0 0.0
        %805 = vmatpush1.msra.mxu0 0.0
        %806 = vmatprep.subr.mxu0 0.0
        %807 = vmatpush1.msra.mxu0 %v608
        %808 = vmatprep.subr.mxu0 0.0
        %809 = vmatpush1.msra.mxu0 %v607
        %810 = vmatprep.subr.mxu0 0.0
        %811 = vmatpush2.msra.mxu0 0.0
        %812 = vmatprep.subr.mxu0 0.0
        %813 = vmatpush2.msra.mxu0 0.0
        %814 = vmatprep.subr.mxu0 0.0
        %815 = vmatpush2.msra.mxu0 0.0
        %816 = vmatprep.subr.mxu0 0.0
        %817 = vmatpush2.msra.mxu0 0.0
        %818 = vmatprep.subr.mxu0 0.0
        %819 = vmatpush2.msra.mxu0 0.0
        %820 = vmatprep.subr.mxu0 0.0
        %821 = vmatpush2.msra.mxu0 0.0
        %822 = vmatprep.subr.mxu0 0.0
        %823 = vmatpush2.msra.mxu0 0.0
        %824 = vmatprep.subr.mxu0 0.0
        %825 = vmatpush2.msra.mxu0 0.0
        %826 = vmatprep.subr.mxu0 0.0
        %827 = vmatpush2.msra.mxu0 0.0
        %828 = vmatprep.subr.mxu0 0.0
        %829 = vmatpush2.msra.mxu0 0.0
        %830 = vmatprep.subr.mxu0 0.0
        %831 = vmatpush2.msra.mxu0 0.0
        %832 = vmatprep.subr.mxu0 0.0
        %833 = vmatpush2.msra.mxu0 0.0
        %834 = vmatprep.subr.mxu0 0.0
        %835 = vmatpush2.msra.mxu0 0.0
        %836 = vmatprep.subr.mxu0 0.0
        %837 = vmatpush2.msra.mxu0 0.0
        %838 = vmatprep.subr.mxu0 0.0
        %839 = vmatpush2.msra.mxu0 0.0
        %840 = vmatprep.subr.mxu0 0.0
        %841 = vmatpush2.msra.mxu0 0.0
        %842 = vmatprep.mubr.f32.mxu0 0.0
        %843 = vmatmul.mubr.f32.gmra.mxu0 %v773
        %v844 = vpop.f32.mrf.mxu0
        %v845 = vadd.f32 0.0, %v844
        %v846 = vpop.f32.mrf.mxu0
        %847 = vmatprep.mubr.f32.mxu0 0.0
        %848 = vmatmul.mubr.f32.gmra.mxu0 %v776
        %v849 = vpop.f32.mrf.mxu0
        %v850 = vadd.f32 0.0, %v849
        %v851 = vpop.f32.mrf.mxu0
        %852 = vdwg.mxu0
        %v853 = vsub.f32 %v683, %v764
        %v854 = vsub.f32 %v688, %v769
        %v855 = vsub.f32 %v845, %v683
        %v856 = vsub.f32 %v850, %v688
        %v857 = vsub.f32 %v855, %v764
        %v858 = vsub.f32 %v856, %v769
        %v859 = vadd.f32 %v853, %v857
        %v860 = vadd.f32 %v854, %v858
        %v862 = vsel %vm609, %v853, 0
        %v865 = vsel %vm609, %v854, 0
        %867 = vmatprep.subr.mxu0 0.0
        %868 = vmatpush1.msra.mxu0 0.0
        %869 = vmatprep.subr.mxu0 0.0
        %870 = vmatpush1.msra.mxu0 0.0
        %871 = vmatprep.subr.mxu0 0.0
        %872 = vmatpush1.msra.mxu0 0.0
        %873 = vmatprep.subr.mxu0 0.0
        %874 = vmatpush1.msra.mxu0 0.0
        %875 = vmatprep.subr.mxu0 0.0
        %876 = vmatpush1.msra.mxu0 0.0
        %877 = vmatprep.subr.mxu0 0.0
        %878 = vmatpush1.msra.mxu0 0.0
        %879 = vmatprep.subr.mxu0 0.0
        %880 = vmatpush1.msra.mxu0 0.0
        %881 = vmatprep.subr.mxu0 0.0
        %882 = vmatpush1.msra.mxu0 0.0
        %883 = vmatprep.subr.mxu0 0.0
        %884 = vmatpush1.msra.mxu0 0.0
        %885 = vmatprep.subr.mxu0 0.0
        %886 = vmatpush1.msra.mxu0 0.0
        %887 = vmatprep.subr.mxu0 0.0
        %888 = vmatpush1.msra.mxu0 0.0
        %889 = vmatprep.subr.mxu0 0.0
        %890 = vmatpush1.msra.mxu0 0.0
        %891 = vmatprep.subr.mxu0 0.0
        %892 = vmatpush1.msra.mxu0 0.0
        %893 = vmatprep.subr.mxu0 0.0
        %894 = vmatpush1.msra.mxu0 0.0
        %895 = vmatprep.subr.mxu0 0.0
        %896 = vmatpush1.msra.mxu0 %v598
        %897 = vmatprep.subr.mxu0 0.0
        %898 = vmatpush1.msra.mxu0 %v597
        %899 = vmatprep.subr.mxu0 0.0
        %900 = vmatpush2.msra.mxu0 0.0
        %901 = vmatprep.subr.mxu0 0.0
        %902 = vmatpush2.msra.mxu0 0.0
        %903 = vmatprep.subr.mxu0 0.0
        %904 = vmatpush2.msra.mxu0 0.0
        %905 = vmatprep.subr.mxu0 0.0
        %906 = vmatpush2.msra.mxu0 0.0
        %907 = vmatprep.subr.mxu0 0.0
        %908 = vmatpush2.msra.mxu0 0.0
        %909 = vmatprep.subr.mxu0 0.0
        %910 = vmatpush2.msra.mxu0 0.0
        %911 = vmatprep.subr.mxu0 0.0
        %912 = vmatpush2.msra.mxu0 0.0
        %913 = vmatprep.subr.mxu0 0.0
        %914 = vmatpush2.msra.mxu0 0.0
        %915 = vmatprep.subr.mxu0 0.0
        %916 = vmatpush2.msra.mxu0 0.0
        %917 = vmatprep.subr.mxu0 0.0
        %918 = vmatpush2.msra.mxu0 0.0
        %919 = vmatprep.subr.mxu0 0.0
        %920 = vmatpush2.msra.mxu0 0.0
        %921 = vmatprep.subr.mxu0 0.0
        %922 = vmatpush2.msra.mxu0 0.0
        %923 = vmatprep.subr.mxu0 0.0
        %924 = vmatpush2.msra.mxu0 0.0
        %925 = vmatprep.subr.mxu0 0.0
        %926 = vmatpush2.msra.mxu0 0.0
        %927 = vmatprep.subr.mxu0 0.0
        %928 = vmatpush2.msra.mxu0 0.0
        %929 = vmatprep.subr.mxu0 0.0
        %930 = vmatpush2.msra.mxu0 0.0
        %931 = vmatprep.mubr.f32.mxu0 0.0
        %932 = vmatmul.mubr.f32.gmra.mxu0 %v862
        %v933 = vpop.f32.mrf.mxu0
        %v934 = vadd.f32 0.0, %v933
        %v935 = vpop.f32.mrf.mxu0
        %936 = vmatprep.mubr.f32.mxu0 0.0
        %937 = vmatmul.mubr.f32.gmra.mxu0 %v865
        %v938 = vpop.f32.mrf.mxu0
        %v939 = vadd.f32 0.0, %v938
        %v940 = vpop.f32.mrf.mxu0
        %941 = vdwg.mxu0
        %v943 = vsel %vm609, %v857, 0
        %v946 = vsel %vm609, %v858, 0
        %948 = vmatprep.subr.mxu0 0.0
        %949 = vmatpush1.msra.mxu0 0.0
        %950 = vmatprep.subr.mxu0 0.0
        %951 = vmatpush1.msra.mxu0 0.0
        %952 = vmatprep.subr.mxu0 0.0
        %953 = vmatpush1.msra.mxu0 0.0
        %954 = vmatprep.subr.mxu0 0.0
        %955 = vmatpush1.msra.mxu0 0.0
        %956 = vmatprep.subr.mxu0 0.0
        %957 = vmatpush1.msra.mxu0 0.0
        %958 = vmatprep.subr.mxu0 0.0
        %959 = vmatpush1.msra.mxu0 0.0
        %960 = vmatprep.subr.mxu0 0.0
        %961 = vmatpush1.msra.mxu0 0.0
        %962 = vmatprep.subr.mxu0 0.0
        %963 = vmatpush1.msra.mxu0 0.0
        %964 = vmatprep.subr.mxu0 0.0
        %965 = vmatpush1.msra.mxu0 0.0
        %966 = vmatprep.subr.mxu0 0.0
        %967 = vmatpush1.msra.mxu0 0.0
        %968 = vmatprep.subr.mxu0 0.0
        %969 = vmatpush1.msra.mxu0 0.0
        %970 = vmatprep.subr.mxu0 0.0
        %971 = vmatpush1.msra.mxu0 0.0
        %972 = vmatprep.subr.mxu0 0.0
        %973 = vmatpush1.msra.mxu0 0.0
        %974 = vmatprep.subr.mxu0 0.0
        %975 = vmatpush1.msra.mxu0 0.0
        %976 = vmatprep.subr.mxu0 0.0
        %977 = vmatpush1.msra.mxu0 %v600
        %978 = vmatprep.subr.mxu0 0.0
        %979 = vmatpush1.msra.mxu0 %v599
        %980 = vmatprep.subr.mxu0 0.0
        %981 = vmatpush2.msra.mxu0 0.0
        %982 = vmatprep.subr.mxu0 0.0
        %983 = vmatpush2.msra.mxu0 0.0
        %984 = vmatprep.subr.mxu0 0.0
        %985 = vmatpush2.msra.mxu0 0.0
        %986 = vmatprep.subr.mxu0 0.0
        %987 = vmatpush2.msra.mxu0 0.0
        %988 = vmatprep.subr.mxu0 0.0
        %989 = vmatpush2.msra.mxu0 0.0
        %990 = vmatprep.subr.mxu0 0.0
        %991 = vmatpush2.msra.mxu0 0.0
        %992 = vmatprep.subr.mxu0 0.0
        %993 = vmatpush2.msra.mxu0 0.0
        %994 = vmatprep.subr.mxu0 0.0
        %995 = vmatpush2.msra.mxu0 0.0
        %996 = vmatprep.subr.mxu0 0.0
        %997 = vmatpush2.msra.mxu0 0.0
        %998 = vmatprep.subr.mxu0 0.0
        %999 = vmatpush2.msra.mxu0 0.0
        %1000 = vmatprep.subr.mxu0 0.0
        %1001 = vmatpush2.msra.mxu0 0.0
        %1002 = vmatprep.subr.mxu0 0.0
        %1003 = vmatpush2.msra.mxu0 0.0
        %1004 = vmatprep.subr.mxu0 0.0
        %1005 = vmatpush2.msra.mxu0 0.0
        %1006 = vmatprep.subr.mxu0 0.0
        %1007 = vmatpush2.msra.mxu0 0.0
        %1008 = vmatprep.subr.mxu0 0.0
        %1009 = vmatpush2.msra.mxu0 0.0
        %1010 = vmatprep.subr.mxu0 0.0
        %1011 = vmatpush2.msra.mxu0 0.0
        %1012 = vmatprep.mubr.f32.mxu0 0.0
        %1013 = vmatmul.mubr.f32.gmra.mxu0 %v943
        %v1014 = vpop.f32.mrf.mxu0
        %v1015 = vadd.f32 0.0, %v1014
        %v1016 = vpop.f32.mrf.mxu0
        %1017 = vmatprep.mubr.f32.mxu0 0.0
        %1018 = vmatmul.mubr.f32.gmra.mxu0 %v946
        %v1019 = vpop.f32.mrf.mxu0
        %v1020 = vadd.f32 0.0, %v1019
        %v1021 = vpop.f32.mrf.mxu0
        %1022 = vdwg.mxu0
        %v1024 = vsel %vm609, %v859, 0
        %v1027 = vsel %vm609, %v860, 0
        %1029 = vmatprep.subr.mxu0 0.0
        %1030 = vmatpush1.msra.mxu0 0.0
        %1031 = vmatprep.subr.mxu0 0.0
        %1032 = vmatpush1.msra.mxu0 0.0
        %1033 = vmatprep.subr.mxu0 0.0
        %1034 = vmatpush1.msra.mxu0 0.0
        %1035 = vmatprep.subr.mxu0 0.0
        %1036 = vmatpush1.msra.mxu0 0.0
        %1037 = vmatprep.subr.mxu0 0.0
        %1038 = vmatpush1.msra.mxu0 0.0
        %1039 = vmatprep.subr.mxu0 0.0
        %1040 = vmatpush1.msra.mxu0 0.0
        %1041 = vmatprep.subr.mxu0 0.0
        %1042 = vmatpush1.msra.mxu0 0.0
        %1043 = vmatprep.subr.mxu0 0.0
        %1044 = vmatpush1.msra.mxu0 0.0
        %1045 = vmatprep.subr.mxu0 0.0
        %1046 = vmatpush1.msra.mxu0 0.0
        %1047 = vmatprep.subr.mxu0 0.0
        %1048 = vmatpush1.msra.mxu0 0.0
        %1049 = vmatprep.subr.mxu0 0.0
        %1050 = vmatpush1.msra.mxu0 0.0
        %1051 = vmatprep.subr.mxu0 0.0
        %1052 = vmatpush1.msra.mxu0 0.0
        %1053 = vmatprep.subr.mxu0 0.0
        %1054 = vmatpush1.msra.mxu0 0.0
        %1055 = vmatprep.subr.mxu0 0.0
        %1056 = vmatpush1.msra.mxu0 0.0
        %1057 = vmatprep.subr.mxu0 0.0
        %1058 = vmatpush1.msra.mxu0 %v602
        %1059 = vmatprep.subr.mxu0 0.0
        %1060 = vmatpush1.msra.mxu0 %v601
        %1061 = vmatprep.subr.mxu0 0.0
        %1062 = vmatpush2.msra.mxu0 0.0
        %1063 = vmatprep.subr.mxu0 0.0
        %1064 = vmatpush2.msra.mxu0 0.0
        %1065 = vmatprep.subr.mxu0 0.0
        %1066 = vmatpush2.msra.mxu0 0.0
        %1067 = vmatprep.subr.mxu0 0.0
        %1068 = vmatpush2.msra.mxu0 0.0
        %1069 = vmatprep.subr.mxu0 0.0
        %1070 = vmatpush2.msra.mxu0 0.0
        %1071 = vmatprep.subr.mxu0 0.0
        %1072 = vmatpush2.msra.mxu0 0.0
        %1073 = vmatprep.subr.mxu0 0.0
        %1074 = vmatpush2.msra.mxu0 0.0
        %1075 = vmatprep.subr.mxu0 0.0
        %1076 = vmatpush2.msra.mxu0 0.0
        %1077 = vmatprep.subr.mxu0 0.0
        %1078 = vmatpush2.msra.mxu0 0.0
        %1079 = vmatprep.subr.mxu0 0.0
        %1080 = vmatpush2.msra.mxu0 0.0
        %1081 = vmatprep.subr.mxu0 0.0
        %1082 = vmatpush2.msra.mxu0 0.0
        %1083 = vmatprep.subr.mxu0 0.0
        %1084 = vmatpush2.msra.mxu0 0.0
        %1085 = vmatprep.subr.mxu0 0.0
        %1086 = vmatpush2.msra.mxu0 0.0
        %1087 = vmatprep.subr.mxu0 0.0
        %1088 = vmatpush2.msra.mxu0 0.0
        %1089 = vmatprep.subr.mxu0 0.0
        %1090 = vmatpush2.msra.mxu0 0.0
        %1091 = vmatprep.subr.mxu0 0.0
        %1092 = vmatpush2.msra.mxu0 0.0
        %1093 = vmatprep.mubr.f32.mxu0 0.0
        %1094 = vmatmul.mubr.f32.gmra.mxu0 %v1024
        %v1095 = vpop.f32.mrf.mxu0
        %v1096 = vadd.f32 0.0, %v1095
        %v1097 = vpop.f32.mrf.mxu0
        %1098 = vmatprep.mubr.f32.mxu0 0.0
        %1099 = vmatmul.mubr.f32.gmra.mxu0 %v1027
        %v1100 = vpop.f32.mrf.mxu0
        %v1101 = vadd.f32 0.0, %v1100
        %v1102 = vpop.f32.mrf.mxu0
        %1103 = vdwg.mxu0
        %v1104 = vsub.f32 %v934, %v1015
        %v1105 = vsub.f32 %v939, %v1020
        %v1106 = vsub.f32 %v1096, %v934
        %v1107 = vsub.f32 %v1101, %v939
        %v1108 = vsub.f32 %v1106, %v1015
        %v1109 = vsub.f32 %v1107, %v1020
        %1110 = vst.msk [vmem:[%s576] sm:$0xff] %vm609, %v1104
        %1111 = vst.msk [vmem:[%s576 + $0x8] sm:$0xff] %vm609, %v1105
        %1112 = vst.msk [vmem:[%s583] sm:$0xff] %vm609, %v1108
        %1113 = vst.msk [vmem:[%s583 + $0x8] sm:$0xff] %vm609, %v1109
        %v1114 = vmul.f32 %v1104, %v1104
        %v1115 = vmul.f32 %v1105, %v1105
        %v1116 = vmul.f32 %v1108, %v1108
        %v1117 = vmul.f32 %v1109, %v1109
        %v1118 = vadd.f32 %v1114, %v1116
        %v1119 = vadd.f32 %v1115, %v1117
        %v1120 = vlaneseq
        %v1121 = vshrl.u32 %v1120, 7
        %v1122 = vadd.s32 %v1121, 8
        %v1123 = vmul.u32 %v1121, 16
        %v1124 = vmul.u32 %v1122, 16
        %v1125 = vlaneseq
        %v1126 = vand.u32 %v1125, 127
        %v1127 = vadd.s32 %v1123, %v1126
        %v1128 = vadd.s32 %v1124, %v1126
        %v1129 = vsel %vm609, %v1118, -inf
        %v1130 = vsel %vm609, %v1119, -inf
        %v1131 = vmax.f32 %v1129, %v1130
        %1132 = vmax.xlane.f32.xlu0 %v1131
        %v1133 = vpop.xlane.xlu0 %1132
        %v1134 = vrot.slane %v1133, 4
        %v1135 = vmax.f32 %v1133, %v1134
        %v1136 = vrot.slane %v1135, 2
        %v1137 = vmax.f32 %v1135, %v1136
        %v1138 = vrot.slane %v1137, 1
        %v1139 = vmax.f32 %v1137, %v1138
        %s1140 = vtos %v1139
        %v1141 = vstv %s1140
        %vm1142 = vcmp.eq.f32.partialorder %v1118, %v1141
        %vm1143 = vcmp.eq.f32.partialorder %v1119, %v1141
        %v1144 = vsel %vm1142, %v1127, 256
        %v1145 = vsel %vm1143, %v1128, 256
        %v1146 = vsel %vm609, %v1144, 2147483647
        %v1147 = vsel %vm609, %v1145, 2147483647
        %vm1148 = vcmp.lt.s32.totalorder %v1146, %v1147
        %v1149 = vsel %vm1148, %v1146, %v1147
        %v1150 = vand.u32 %v1149, 65535
        %v1151 = vshra.s32 %v1149, 16
        %v1152 = vcvt.s32.f32 %v1150
        %v1153 = vcvt.s32.f32 %v1151
        %1154 = vmin.xlane.f32.xlu0 %v1153
        %v1155 = vpop.xlane.xlu0 %1154
        %vm1156 = vcmp.eq.f32.partialorder %v1153, %v1155
        %v1157 = vsel %vm1156, %v1152, inf
        %1158 = vmin.xlane.f32.xlu0 %v1157
        %v1159 = vpop.xlane.xlu0 %1158
        %v1160 = vcvt.f32.s32 %v1159
        %v1161 = vcvt.f32.s32 %v1155
        %v1162 = vshll.u32 %v1161, 16
        %v1163 = vadd.s32 %v1162, %v1160
        %v1164 = vrot.slane %v1163, 4
        %vm1165 = vcmp.lt.s32.totalorder %v1163, %v1164
        %v1166 = vsel %vm1165, %v1163, %v1164
        %v1167 = vrot.slane %v1166, 2
        %vm1168 = vcmp.lt.s32.totalorder %v1166, %v1167
        %v1169 = vsel %vm1168, %v1166, %v1167
        %v1170 = vrot.slane %v1169, 1
        %vm1171 = vcmp.lt.s32.totalorder %v1169, %v1170
        %v1172 = vsel %vm1171, %v1169, %v1170
        %s1173 = vtos %v1172
        %v1174 = vstv %s1173
        %vm1175 = vcmp.eq.s32.totalorder %v1127, %v1174
        %vm1176 = vcmp.eq.s32.totalorder %v1128, %v1174
        %v1177 = vsel %vm1175, -1.0, %v1118
        %v1178 = vsel %vm1176, -1.0, %v1119
        %v1179 = vsel %vm609, %v1177, -inf
        %v1180 = vsel %vm609, %v1178, -inf
        %v1181 = vmax.f32 %v1179, %v1180
        %1182 = vmax.xlane.f32.xlu0 %v1181
        %v1183 = vpop.xlane.xlu0 %1182
        %v1184 = vrot.slane %v1183, 4
        %v1185 = vmax.f32 %v1183, %v1184
        %v1186 = vrot.slane %v1185, 2
        %v1187 = vmax.f32 %v1185, %v1186
        %v1188 = vrot.slane %v1187, 1
        %v1189 = vmax.f32 %v1187, %v1188
        %s1190 = vtos %v1189
        %v1191 = vstv %s1190
        %vm1192 = vcmp.eq.f32.partialorder %v1177, %v1191
        %vm1193 = vcmp.eq.f32.partialorder %v1178, %v1191
        %v1194 = vsel %vm1192, %v1127, 256
        %v1195 = vsel %vm1193, %v1128, 256
        %v1196 = vsel %vm609, %v1194, 2147483647
        %v1197 = vsel %vm609, %v1195, 2147483647
        %vm1198 = vcmp.lt.s32.totalorder %v1196, %v1197
        %v1199 = vsel %vm1198, %v1196, %v1197
        %v1200 = vand.u32 %v1199, 65535
        %v1201 = vshra.s32 %v1199, 16
        %v1202 = vcvt.s32.f32 %v1200
        %v1203 = vcvt.s32.f32 %v1201
        %1204 = vmin.xlane.f32.xlu0 %v1203
        %v1205 = vpop.xlane.xlu0 %1204
        %vm1206 = vcmp.eq.f32.partialorder %v1203, %v1205
        %v1207 = vsel %vm1206, %v1202, inf
        %1208 = vmin.xlane.f32.xlu0 %v1207
        %v1209 = vpop.xlane.xlu0 %1208
        %v1210 = vcvt.f32.s32 %v1209
        %v1211 = vcvt.f32.s32 %v1205
        %v1212 = vshll.u32 %v1211, 16
        %v1213 = vadd.s32 %v1212, %v1210
        %v1214 = vrot.slane %v1213, 4
        %vm1215 = vcmp.lt.s32.totalorder %v1213, %v1214
        %v1216 = vsel %vm1215, %v1213, %v1214
        %v1217 = vrot.slane %v1216, 2
        %vm1218 = vcmp.lt.s32.totalorder %v1216, %v1217
        %v1219 = vsel %vm1218, %v1216, %v1217
        %v1220 = vrot.slane %v1219, 1
        %vm1221 = vcmp.lt.s32.totalorder %v1219, %v1220
        %v1222 = vsel %vm1221, %v1219, %v1220
        %s1223 = vtos %v1222
        %v1224 = vstv %s1223
        %vm1225 = vcmp.eq.s32.totalorder %v1127, %v1224
        %vm1226 = vcmp.eq.s32.totalorder %v1128, %v1224
        %v1227 = vsel %vm1225, -1.0, %v1177
        %v1228 = vsel %vm1226, -1.0, %v1178
        %v1229 = vsel %vm609, %v1227, -inf
        %v1230 = vsel %vm609, %v1228, -inf
        %v1231 = vmax.f32 %v1229, %v1230
        %1232 = vmax.xlane.f32.xlu0 %v1231
        %v1233 = vpop.xlane.xlu0 %1232
        %v1234 = vrot.slane %v1233, 4
        %v1235 = vmax.f32 %v1233, %v1234
        %v1236 = vrot.slane %v1235, 2
        %v1237 = vmax.f32 %v1235, %v1236
        %v1238 = vrot.slane %v1237, 1
        %v1239 = vmax.f32 %v1237, %v1238
        %s1240 = vtos %v1239
        %v1241 = vstv %s1240
        %vm1242 = vcmp.eq.f32.partialorder %v1227, %v1241
        %vm1243 = vcmp.eq.f32.partialorder %v1228, %v1241
        %v1244 = vsel %vm1242, %v1127, 256
        %v1245 = vsel %vm1243, %v1128, 256
        %v1246 = vsel %vm609, %v1244, 2147483647
        %v1247 = vsel %vm609, %v1245, 2147483647
        %vm1248 = vcmp.lt.s32.totalorder %v1246, %v1247
        %v1249 = vsel %vm1248, %v1246, %v1247
        %v1250 = vand.u32 %v1249, 65535
        %v1251 = vshra.s32 %v1249, 16
        %v1252 = vcvt.s32.f32 %v1250
        %v1253 = vcvt.s32.f32 %v1251
        %1254 = vmin.xlane.f32.xlu0 %v1253
        %v1255 = vpop.xlane.xlu0 %1254
        %vm1256 = vcmp.eq.f32.partialorder %v1253, %v1255
        %v1257 = vsel %vm1256, %v1252, inf
        %1258 = vmin.xlane.f32.xlu0 %v1257
        %v1259 = vpop.xlane.xlu0 %1258
        %v1260 = vcvt.f32.s32 %v1259
        %v1261 = vcvt.f32.s32 %v1255
        %v1262 = vshll.u32 %v1261, 16
        %v1263 = vadd.s32 %v1262, %v1260
        %v1264 = vrot.slane %v1263, 4
        %vm1265 = vcmp.lt.s32.totalorder %v1263, %v1264
        %v1266 = vsel %vm1265, %v1263, %v1264
        %v1267 = vrot.slane %v1266, 2
        %vm1268 = vcmp.lt.s32.totalorder %v1266, %v1267
        %v1269 = vsel %vm1268, %v1266, %v1267
        %v1270 = vrot.slane %v1269, 1
        %vm1271 = vcmp.lt.s32.totalorder %v1269, %v1270
        %v1272 = vsel %vm1271, %v1269, %v1270
        %s1273 = vtos %v1272
        %v1274 = vstv %s1273
        %vm1275 = vcmp.eq.s32.totalorder %v1127, %v1274
        %vm1276 = vcmp.eq.s32.totalorder %v1128, %v1274
        %v1277 = vsel %vm1275, -1.0, %v1227
        %v1278 = vsel %vm1276, -1.0, %v1228
        %v1279 = vsel %vm609, %v1277, -inf
        %v1280 = vsel %vm609, %v1278, -inf
        %v1281 = vmax.f32 %v1279, %v1280
        %1282 = vmax.xlane.f32.xlu0 %v1281
        %v1283 = vpop.xlane.xlu0 %1282
        %v1284 = vrot.slane %v1283, 4
        %v1285 = vmax.f32 %v1283, %v1284
        %v1286 = vrot.slane %v1285, 2
        %v1287 = vmax.f32 %v1285, %v1286
        %v1288 = vrot.slane %v1287, 1
        %v1289 = vmax.f32 %v1287, %v1288
        %s1290 = vtos %v1289
        %v1291 = vstv %s1290
        %vm1292 = vcmp.eq.f32.partialorder %v1277, %v1291
        %vm1293 = vcmp.eq.f32.partialorder %v1278, %v1291
        %v1294 = vsel %vm1292, %v1127, 256
        %v1295 = vsel %vm1293, %v1128, 256
        %v1296 = vsel %vm609, %v1294, 2147483647
        %v1297 = vsel %vm609, %v1295, 2147483647
        %vm1298 = vcmp.lt.s32.totalorder %v1296, %v1297
        %v1299 = vsel %vm1298, %v1296, %v1297
        %v1300 = vand.u32 %v1299, 65535
        %v1301 = vshra.s32 %v1299, 16
        %v1302 = vcvt.s32.f32 %v1300
        %v1303 = vcvt.s32.f32 %v1301
        %1304 = vmin.xlane.f32.xlu0 %v1303
        %v1305 = vpop.xlane.xlu0 %1304
        %vm1306 = vcmp.eq.f32.partialorder %v1303, %v1305
        %v1307 = vsel %vm1306, %v1302, inf
        %1308 = vmin.xlane.f32.xlu0 %v1307
        %v1309 = vpop.xlane.xlu0 %1308
        %v1310 = vcvt.f32.s32 %v1309
        %v1311 = vcvt.f32.s32 %v1305
        %v1312 = vshll.u32 %v1311, 16
        %v1313 = vadd.s32 %v1312, %v1310
        %v1314 = vrot.slane %v1313, 4
        %vm1315 = vcmp.lt.s32.totalorder %v1313, %v1314
        %v1316 = vsel %vm1315, %v1313, %v1314
        %v1317 = vrot.slane %v1316, 2
        %vm1318 = vcmp.lt.s32.totalorder %v1316, %v1317
        %v1319 = vsel %vm1318, %v1316, %v1317
        %v1320 = vrot.slane %v1319, 1
        %vm1321 = vcmp.lt.s32.totalorder %v1319, %v1320
        %v1322 = vsel %vm1321, %v1319, %v1320
        %s1323 = vtos %v1322
        %v1324 = vstv %s1323
        %vm1325 = vcmp.eq.s32.totalorder %v1127, %v1324
        %vm1326 = vcmp.eq.s32.totalorder %v1128, %v1324
        %v1327 = vsel %vm1325, -1.0, %v1277
        %v1328 = vsel %vm1326, -1.0, %v1278
        %v1329 = vsel %vm609, %v1327, -inf
        %v1330 = vsel %vm609, %v1328, -inf
        %v1331 = vmax.f32 %v1329, %v1330
        %1332 = vmax.xlane.f32.xlu0 %v1331
        %v1333 = vpop.xlane.xlu0 %1332
        %v1334 = vrot.slane %v1333, 4
        %v1335 = vmax.f32 %v1333, %v1334
        %v1336 = vrot.slane %v1335, 2
        %v1337 = vmax.f32 %v1335, %v1336
        %v1338 = vrot.slane %v1337, 1
        %v1339 = vmax.f32 %v1337, %v1338
        %s1340 = vtos %v1339
        %v1341 = vstv %s1340
        %vm1342 = vcmp.eq.f32.partialorder %v1327, %v1341
        %vm1343 = vcmp.eq.f32.partialorder %v1328, %v1341
        %v1344 = vsel %vm1342, %v1127, 256
        %v1345 = vsel %vm1343, %v1128, 256
        %v1346 = vsel %vm609, %v1344, 2147483647
        %v1347 = vsel %vm609, %v1345, 2147483647
        %vm1348 = vcmp.lt.s32.totalorder %v1346, %v1347
        %v1349 = vsel %vm1348, %v1346, %v1347
        %v1350 = vand.u32 %v1349, 65535
        %v1351 = vshra.s32 %v1349, 16
        %v1352 = vcvt.s32.f32 %v1350
        %v1353 = vcvt.s32.f32 %v1351
        %1354 = vmin.xlane.f32.xlu0 %v1353
        %v1355 = vpop.xlane.xlu0 %1354
        %vm1356 = vcmp.eq.f32.partialorder %v1353, %v1355
        %v1357 = vsel %vm1356, %v1352, inf
        %1358 = vmin.xlane.f32.xlu0 %v1357
        %v1359 = vpop.xlane.xlu0 %1358
        %v1360 = vcvt.f32.s32 %v1359
        %v1361 = vcvt.f32.s32 %v1355
        %v1362 = vshll.u32 %v1361, 16
        %v1363 = vadd.s32 %v1362, %v1360
        %v1364 = vrot.slane %v1363, 4
        %vm1365 = vcmp.lt.s32.totalorder %v1363, %v1364
        %v1366 = vsel %vm1365, %v1363, %v1364
        %v1367 = vrot.slane %v1366, 2
        %vm1368 = vcmp.lt.s32.totalorder %v1366, %v1367
        %v1369 = vsel %vm1368, %v1366, %v1367
        %v1370 = vrot.slane %v1369, 1
        %vm1371 = vcmp.lt.s32.totalorder %v1369, %v1370
        %v1372 = vsel %vm1371, %v1369, %v1370
        %s1373 = vtos %v1372
        %v1374 = vstv %s1373
        %vm1375 = vcmp.eq.s32.totalorder %v1127, %v1374
        %vm1376 = vcmp.eq.s32.totalorder %v1128, %v1374
        %v1377 = vsel %vm1375, -1.0, %v1327
        %v1378 = vsel %vm1376, -1.0, %v1328
        %v1379 = vsel %vm609, %v1377, -inf
        %v1380 = vsel %vm609, %v1378, -inf
        %v1381 = vmax.f32 %v1379, %v1380
        %1382 = vmax.xlane.f32.xlu0 %v1381
        %v1383 = vpop.xlane.xlu0 %1382
        %v1384 = vrot.slane %v1383, 4
        %v1385 = vmax.f32 %v1383, %v1384
        %v1386 = vrot.slane %v1385, 2
        %v1387 = vmax.f32 %v1385, %v1386
        %v1388 = vrot.slane %v1387, 1
        %v1389 = vmax.f32 %v1387, %v1388
        %s1390 = vtos %v1389
        %v1391 = vstv %s1390
        %vm1392 = vcmp.eq.f32.partialorder %v1377, %v1391
        %vm1393 = vcmp.eq.f32.partialorder %v1378, %v1391
        %v1394 = vsel %vm1392, %v1127, 256
        %v1395 = vsel %vm1393, %v1128, 256
        %v1396 = vsel %vm609, %v1394, 2147483647
        %v1397 = vsel %vm609, %v1395, 2147483647
        %vm1398 = vcmp.lt.s32.totalorder %v1396, %v1397
        %v1399 = vsel %vm1398, %v1396, %v1397
        %v1400 = vand.u32 %v1399, 65535
        %v1401 = vshra.s32 %v1399, 16
        %v1402 = vcvt.s32.f32 %v1400
        %v1403 = vcvt.s32.f32 %v1401
        %1404 = vmin.xlane.f32.xlu0 %v1403
        %v1405 = vpop.xlane.xlu0 %1404
        %vm1406 = vcmp.eq.f32.partialorder %v1403, %v1405
        %v1407 = vsel %vm1406, %v1402, inf
        %1408 = vmin.xlane.f32.xlu0 %v1407
        %v1409 = vpop.xlane.xlu0 %1408
        %v1410 = vcvt.f32.s32 %v1409
        %v1411 = vcvt.f32.s32 %v1405
        %v1412 = vshll.u32 %v1411, 16
        %v1413 = vadd.s32 %v1412, %v1410
        %v1414 = vrot.slane %v1413, 4
        %vm1415 = vcmp.lt.s32.totalorder %v1413, %v1414
        %v1416 = vsel %vm1415, %v1413, %v1414
        %v1417 = vrot.slane %v1416, 2
        %vm1418 = vcmp.lt.s32.totalorder %v1416, %v1417
        %v1419 = vsel %vm1418, %v1416, %v1417
        %v1420 = vrot.slane %v1419, 1
        %vm1421 = vcmp.lt.s32.totalorder %v1419, %v1420
        %v1422 = vsel %vm1421, %v1419, %v1420
        %s1423 = vtos %v1422
        %v1424 = vstv %s1423
        %vm1425 = vcmp.eq.s32.totalorder %v1127, %v1424
        %vm1426 = vcmp.eq.s32.totalorder %v1128, %v1424
        %v1427 = vsel %vm1425, -1.0, %v1377
        %v1428 = vsel %vm1426, -1.0, %v1378
        %v1429 = vsel %vm609, %v1427, -inf
        %v1430 = vsel %vm609, %v1428, -inf
        %v1431 = vmax.f32 %v1429, %v1430
        %1432 = vmax.xlane.f32.xlu0 %v1431
        %v1433 = vpop.xlane.xlu0 %1432
        %v1434 = vrot.slane %v1433, 4
        %v1435 = vmax.f32 %v1433, %v1434
        %v1436 = vrot.slane %v1435, 2
        %v1437 = vmax.f32 %v1435, %v1436
        %v1438 = vrot.slane %v1437, 1
        %v1439 = vmax.f32 %v1437, %v1438
        %s1440 = vtos %v1439
        %v1441 = vstv %s1440
        %vm1442 = vcmp.eq.f32.partialorder %v1427, %v1441
        %vm1443 = vcmp.eq.f32.partialorder %v1428, %v1441
        %v1444 = vsel %vm1442, %v1127, 256
        %v1445 = vsel %vm1443, %v1128, 256
        %v1446 = vsel %vm609, %v1444, 2147483647
        %v1447 = vsel %vm609, %v1445, 2147483647
        %vm1448 = vcmp.lt.s32.totalorder %v1446, %v1447
        %v1449 = vsel %vm1448, %v1446, %v1447
        %v1450 = vand.u32 %v1449, 65535
        %v1451 = vshra.s32 %v1449, 16
        %v1452 = vcvt.s32.f32 %v1450
        %v1453 = vcvt.s32.f32 %v1451
        %1454 = vmin.xlane.f32.xlu0 %v1453
        %v1455 = vpop.xlane.xlu0 %1454
        %vm1456 = vcmp.eq.f32.partialorder %v1453, %v1455
        %v1457 = vsel %vm1456, %v1452, inf
        %1458 = vmin.xlane.f32.xlu0 %v1457
        %v1459 = vpop.xlane.xlu0 %1458
        %v1460 = vcvt.f32.s32 %v1459
        %v1461 = vcvt.f32.s32 %v1455
        %v1462 = vshll.u32 %v1461, 16
        %v1463 = vadd.s32 %v1462, %v1460
        %v1464 = vrot.slane %v1463, 4
        %vm1465 = vcmp.lt.s32.totalorder %v1463, %v1464
        %v1466 = vsel %vm1465, %v1463, %v1464
        %v1467 = vrot.slane %v1466, 2
        %vm1468 = vcmp.lt.s32.totalorder %v1466, %v1467
        %v1469 = vsel %vm1468, %v1466, %v1467
        %v1470 = vrot.slane %v1469, 1
        %vm1471 = vcmp.lt.s32.totalorder %v1469, %v1470
        %v1472 = vsel %vm1471, %v1469, %v1470
        %s1473 = vtos %v1472
        %v1474 = vstv %s1473
        %vm1475 = vcmp.eq.s32.totalorder %v1127, %v1474
        %vm1476 = vcmp.eq.s32.totalorder %v1128, %v1474
        %v1477 = vsel %vm1475, -1.0, %v1427
        %v1478 = vsel %vm1476, -1.0, %v1428
        %v1479 = vsel %vm609, %v1477, -inf
        %v1480 = vsel %vm609, %v1478, -inf
        %v1481 = vmax.f32 %v1479, %v1480
        %1482 = vmax.xlane.f32.xlu0 %v1481
        %v1483 = vpop.xlane.xlu0 %1482
        %v1484 = vrot.slane %v1483, 4
        %v1485 = vmax.f32 %v1483, %v1484
        %v1486 = vrot.slane %v1485, 2
        %v1487 = vmax.f32 %v1485, %v1486
        %v1488 = vrot.slane %v1487, 1
        %v1489 = vmax.f32 %v1487, %v1488
        %s1490 = vtos %v1489
        %v1491 = vmul.u32 %v1121, 128
        %v1492 = vadd.s32 %v1491, %v1126
        %vm1493 = vcmp.eq.s32.totalorder %v1492, 0
        %v1494 = vsel %vm1493, %v1141, -1.0
        %vm1495 = vcmp.eq.s32.totalorder %v1492, 1
        %v1496 = vsel %vm1495, %v1191, %v1494
        %vm1497 = vcmp.eq.s32.totalorder %v1492, 2
        %v1498 = vsel %vm1497, %v1241, %v1496
        %vm1499 = vcmp.eq.s32.totalorder %v1492, 3
        %v1500 = vsel %vm1499, %v1291, %v1498
        %vm1501 = vcmp.eq.s32.totalorder %v1492, 4
        %v1502 = vsel %vm1501, %v1341, %v1500
        %vm1503 = vcmp.eq.s32.totalorder %v1492, 5
        %v1504 = vsel %vm1503, %v1391, %v1502
        %vm1505 = vcmp.eq.s32.totalorder %v1492, 6
        %v1506 = vsel %vm1505, %v1441, %v1504
        %vm1507 = vcmp.eq.s32.totalorder %v1492, 7
        %v1508 = vstv %s1490
        %v1509 = vsel %vm1507, %v1508, %v1506
        %1510 = vst [vmem:[%s590] sm:$0xff] %v1509
        %s1511 = sand.u32 %s267, 1
        %s1512 = scalar_lea.sflag [#allocation4], %s1511
        %s1513 = sand.u32 %s267, 1
        %s1514 = smul.addr %s1513, 16
        %s1515 = scalar_lea.vmem [#allocation17], %s1514
        %s1516 = sand.u32 %s39, 1
        %s1517 = scalar_lea.sflag [#allocation19], %s1516
        %s1518 = sand.u32 %s293, 1
        %s1519 = smul.addr %s1518, 16
        %s1520 = scalar_lea.vmem [#allocation18], %s1519
        %s1521 = sand.u32 %s39, 1
        %s1522 = scalar_lea.sflag [#allocation19], %s1521
        %s1523 = sand.u32 %s319, 1
        %s1524 = smul.addr %s1523, 8
        %s1525 = scalar_lea.vmem [#allocation20], %s1524
        // Predicated region
        $region97: #{tpu_custom_call.1} parent=59 // pred_check
          %p1526 = pneg %p277
        $region98: #{tpu_custom_call.1} parent=59 // pred_check_branch
          %1528 = sbr.rel (%p1526) target = $region100
        $region99: #{tpu_custom_call.1} parent=59 // pred_region
          %s1530 = ssub.s32 256, 256
          %1531 = vsyncadd %s1512, %s1530
          %s1532 = smul.addr %s39, 2
          %s1533 = smul.addr %s1532, 128
          %s1534 = scalar_lea.hbm %s10, %s1533
          %s1535 = sshll.u32 %s1515, 4
          %s1536 = int_to_ptr.vmem [resolvable:$true] %s1535
          %1541 = dma.vmem_to_hbm [thread:$0]  %s1536, 256, %s1534, %s1512, 128, 128, 8
        $region100: #{tpu_custom_call.1} parent=59 // pred_fallthru
          _
        // Predicated region
        $region101: #{tpu_custom_call.1} parent=59 // pred_check
          %p1542 = pneg %p303
        $region102: #{tpu_custom_call.1} parent=59 // pred_check_branch
          %1544 = sbr.rel (%p1542) target = $region104
        $region103: #{tpu_custom_call.1} parent=59 // pred_region
          %s1546 = ssub.s32 256, 256
          %1547 = vsyncadd %s1517, %s1546
          %s1548 = smul.addr %s39, 2
          %s1549 = smul.addr %s1548, 128
          %s1550 = scalar_lea.hbm %s11, %s1549
          %s1551 = sshll.u32 %s1520, 4
          %s1552 = int_to_ptr.vmem [resolvable:$true] %s1551
          %1557 = dma.vmem_to_hbm [thread:$0]  %s1552, 256, %s1550, %s1517, 128, 128, 8
        $region104: #{tpu_custom_call.1} parent=59 // pred_fallthru
          _
        // Predicated region
        $region105: #{tpu_custom_call.1} parent=59 // pred_check
          %p1558 = pneg %p329
        $region106: #{tpu_custom_call.1} parent=59 // pred_check_branch
          %1560 = sbr.rel (%p1558) target = $region108
        $region107: #{tpu_custom_call.1} parent=59 // pred_region
          %s1562 = ssub.s32 128, 128
          %1563 = vsyncadd %s1522, %s1562
          %s1564 = smul.addr %s39, 128
          %s1565 = scalar_lea.hbm %s12, %s1564
          %s1567 = sshll.u32 %s1525, 4
          %s1568 = int_to_ptr.vmem [resolvable:$true] %s1567
          %1570 = dma.vmem_to_hbm [thread:$0]  %s1568, 128, %s1565, %s1522
        $region108: #{tpu_custom_call.1} parent=59 // pred_fallthru
          _
      $region60: #{tpu_custom_call.1} parent=5 // pred_fallthru
        _
      %p1571 = scmp.le.s32.totalorder 2, %s34
      // Predicated region
      $region109: #{tpu_custom_call.1} parent=5 // pred_check
        %p1572 = pneg %p1571
      $region110: #{tpu_custom_call.1} parent=5 // pred_check_branch
        %1574 = sbr.rel (%p1572) target = $region112
      $region111: #{tpu_custom_call.1} parent=5 // pred_region
        %s1575 = ssub.s32 %s34, 2
        // Predicated region
        $region113: #{tpu_custom_call.1} parent=111 // pred_check
          %p1576 = pneg %p283
        $region114: #{tpu_custom_call.1} parent=111 // pred_check_branch
          %1578 = sbr.rel (%p1576) target = $region116
        $region115: #{tpu_custom_call.1} parent=111 // pred_region
          %s1579 = sand.u32 %s268, 1
          %s1580 = scalar_lea.sflag [#allocation4], %s1579
          %s1581 = sand.u32 %s268, 1
          %s1582 = smul.addr %s1581, 16
          %s1583 = scalar_lea.vmem [#allocation17], %s1582
          %1584 = dma.done %s1580, 256
        $region116: #{tpu_custom_call.1} parent=111 // pred_fallthru
          _
        // Predicated region
        $region117: #{tpu_custom_call.1} parent=111 // pred_check
          %p1585 = pneg %p309
        $region118: #{tpu_custom_call.1} parent=111 // pred_check_branch
          %1587 = sbr.rel (%p1585) target = $region120
        $region119: #{tpu_custom_call.1} parent=111 // pred_region
          %s1588 = sand.u32 %s40, 1
          %s1589 = scalar_lea.sflag [#allocation19], %s1588
          %s1590 = sand.u32 %s294, 1
          %s1591 = smul.addr %s1590, 16
          %s1592 = scalar_lea.vmem [#allocation18], %s1591
          %1593 = dma.done %s1589, 256
        $region120: #{tpu_custom_call.1} parent=111 // pred_fallthru
          _
        // Predicated region
        $region121: #{tpu_custom_call.1} parent=111 // pred_check
          %p1594 = pneg %p335
        $region122: #{tpu_custom_call.1} parent=111 // pred_check_branch
          %1596 = sbr.rel (%p1594) target = $region124
        $region123: #{tpu_custom_call.1} parent=111 // pred_region
          %s1597 = sand.u32 %s40, 1
          %s1598 = scalar_lea.sflag [#allocation19], %s1597
          %s1599 = sand.u32 %s320, 1
          %s1600 = smul.addr %s1599, 8
          %s1601 = scalar_lea.vmem [#allocation20], %s1600
          %1602 = dma.done %s1598, 128
        $region124: #{tpu_custom_call.1} parent=111 // pred_fallthru
          _
      $region112: #{tpu_custom_call.1} parent=5 // pred_fallthru
        _
    $region6: #{tpu_custom_call.1} parent=1 // loop_footer
      %s38 = sadd.s32 1, %s34
    $region7: #{tpu_custom_call.1} parent=1 // loop_footer_branch
      %33 = sbr.rel target = $region3
    $region8: #{tpu_custom_call.1} parent=1 // loop_exit
      _
    %1603 = vsyncpa [#allocation3], 1
    %s1604 = scalar_lea.sflag [#allocation3], 1
    %1605 = vsyncpa %s1604, 1
    %1606 = vsyncpa [#allocation6], 1
    %s1607 = scalar_lea.sflag [#allocation6], 1
    %1608 = vsyncpa %s1607, 1
    %1609 = vsyncpa [#allocation9], 1
    %1610 = vsyncpa [#allocation12], 1
    %1611 = vsyncpa [#allocation15], 1
    %1612 = vsyncpa [#allocation4], 1
    %s1613 = scalar_lea.sflag [#allocation4], 1
    %1614 = vsyncpa %s1613, 1
    %1615 = vsyncpa [#allocation19], 1
    %s1616 = scalar_lea.sflag [#allocation19], 1
    %1617 = vsyncpa %s1616, 1

</llo_original>
